<compile_context>
chip_gen: v7x
topology: tpu7x:2x2x1
jax: 0.10.0
libtpu: 0.0.40
codegen_flags: <defaults>
</compile_context>

<pallas_src>
import functools

import jax
import jax.numpy as jnp
from jax import lax
from jax.experimental import pallas as pl
from jax.experimental.pallas import tpu as pltpu  # noqa: F401  (VMEM/CompilerParams only needed at larger shapes)


def _sigmoid(x):
    # sigmoid(x) = 0.5*tanh(x/2) + 0.5 -> exactly one EUP push.
    return 0.5 * jnp.tanh(0.5 * x) + 0.5


# ----------------------------------------------------------------------------
# Fused Pallas kernel (entire model forward, gridless, everything VMEM-resident)
# ----------------------------------------------------------------------------
def fused_model_kernel(
    x_ref,
    wih1_ref, whh1_ref, bi1_ref, bhn1_ref,
    fc1w_ref, fc1b_ref,
    wih2_ref, whh2_ref, bi2_ref, bhn2_ref,
    fc2w_ref, fc2b_ref,
    dirmask_ref,
    out_ref,
    *, T, B, H,
):
    f32 = jnp.float32
    B2 = 2 * B                                   # == 8 sublanes at the test shape
    dir_mask = dirmask_ref[...]                  # (2B, 2H): fwd rows [1|0], bwd rows [0|1]

    def bidir_gru(x2d, wih_pack, bias_pack, whh_vpack, bhh_n):
        # --- hoisted input projection for BOTH directions (one matmul).
        #     cols 0:3H = forward gi, cols 3H:6H = backward gi.
        #     bih (both dirs) + r/z part of bhh already folded into bias_pack.
        gi_all = jnp.dot(x2d, wih_pack, preferred_element_type=f32) + bias_pack   # (T*B, 6H)
        gi_f = gi_all[:, :3 * H]
        gi_b = gi_all[:, 3 * H:]

        # --- one-time re-layout into the per-step stacked slab:
        #     rows [s*2B : s*2B+B]     = forward gi at time s
        #     rows [s*2B+B : (s+1)*2B] = backward gi at time T-1-s
        pieces = []
        for s in range(T):
            pieces.append(gi_f[s * B:(s + 1) * B, :])
            pieces.append(gi_b[(T - 1 - s) * B:(T - s) * B, :])
        gi_stack = jnp.concatenate(pieces, axis=0)                                 # (T*2B, 3H)

        # --- serial recurrence: one stacked state, one matmul, two EUP pushes / step
        h = jnp.zeros((B2, H), f32)
        hs = []
        for s in range(T):
            gi_s = gi_stack[s * B2:(s + 1) * B2, :]                    # (2B, 3H), sublane-aligned
            # zero-block widening so a single matmul applies Whh_f to the fwd
            # rows and Whh_b to the bwd rows.
            h_wide = jnp.concatenate([h, h], axis=1) * dir_mask        # (2B, 2H)
            gh = jnp.dot(h_wide, whh_vpack, preferred_element_type=f32)  # (2B, 3H)

            rz = _sigmoid(gi_s[:, :2 * H] + gh[:, :2 * H])             # r and z in one push
            r = rz[:, :H]
            z = rz[:, H:2 * H]
            n = jnp.tanh(gi_s[:, 2 * H:] + r * (gh[:, 2 * H:] + bhh_n))
            h = n + z * (h - n)                                        # == (1-z)*n + z*h
            hs.append(h)

        # --- one-time reconstruction of the layer output in time-major order:
        #     row t*B+b, cols [0:H] = fwd state at time t, [H:2H] = bwd state at time t
        out_pieces = []
        for t in range(T):
            f = hs[t][0:B, :]                 # forward state for time t
            b = hs[T - 1 - t][B:B2, :]        # backward state for time t (computed at step T-1-t)
            out_pieces.append(jnp.concatenate([f, b], axis=1))          # (B, 2H)
        return jnp.concatenate(out_pieces, axis=0)                      # (T*B, 2H)

    x2d = x_ref[...]                                                    # (T*B, D)

    # ---- layer 1: bi-GRU -> fc1 + ReLU
    out1 = bidir_gru(x2d, wih1_ref[...], bi1_ref[...], whh1_ref[...], bhn1_ref[...])
    h1 = jnp.maximum(
        jnp.dot(out1, fc1w_ref[...], preferred_element_type=f32) + fc1b_ref[...], 0.0)

    # ---- layer 2: bi-GRU -> fc2 + ReLU
    out2 = bidir_gru(h1, wih2_ref[...], bi2_ref[...], whh2_ref[...], bhn2_ref[...])
    y = jnp.maximum(
        jnp.dot(out2, fc2w_ref[...], preferred_element_type=f32) + fc2b_ref[...], 0.0)

    out_ref[...] = y.astype(out_ref.dtype)


# ----------------------------------------------------------------------------
# Wrapper + one-time (outside jit) weight packing
# ----------------------------------------------------------------------------
def pack_params(params, B):
    """Pack per-direction GRU weights into the layouts the kernel wants."""
    H = params["rnn1"]["whh_f"].shape[0]

    def pack_gru(p):
        zpad = jnp.zeros((1, H), jnp.float32)
        wih = jnp.concatenate([p["wih_f"], p["wih_b"]], axis=1)                    # (Din, 6H)
        bias = jnp.concatenate(
            [p["bih_f"] + jnp.concatenate([p["bhh_f"][:, :2 * H], zpad], axis=1),
             p["bih_b"] + jnp.concatenate([p["bhh_b"][:, :2 * H], zpad], axis=1)],
            axis=1)                                                                # (1, 6H)
        whh = jnp.concatenate([p["whh_f"], p["whh_b"]], axis=0)                    # (2H, 3H)
        bhn = jnp.concatenate(
            [jnp.broadcast_to(p["bhh_f"][:, 2 * H:], (B, H)),
             jnp.broadcast_to(p["bhh_b"][:, 2 * H:], (B, H))], axis=0)             # (2B, H)
        return wih, bias, whh, bhn

    wih1, bi1, whh1, bhn1 = pack_gru(params["rnn1"])
    wih2, bi2, whh2, bhn2 = pack_gru(params["rnn2"])
    ones = jnp.ones((B, H), jnp.float32)
    zeros = jnp.zeros((B, H), jnp.float32)
    dir_mask = jnp.concatenate(
        [jnp.concatenate([ones, zeros], axis=1),
         jnp.concatenate([zeros, ones], axis=1)], axis=0)                          # (2B, 2H)
    return {
        "wih1": wih1, "bi1": bi1, "whh1": whh1, "bhn1": bhn1,
        "wih2": wih2, "bi2": bi2, "whh2": whh2, "bhn2": bhn2,
        "fc1_w": params["fc1_w"], "fc1_b": params["fc1_b"],
        "fc2_w": params["fc2_w"], "fc2_b": params["fc2_b"],
        "dir_mask": dir_mask,
    }


@jax.jit
def model_forward(x, packed):
    """x: (B, T, input_dim) -> (B, T, out_dim), matching PyTorch forward()."""
    B, T, D = x.shape
    H = packed["whh1"].shape[0] // 2
    O = packed["fc2_w"].shape[1]

    # batch-first -> time-major flattened rows (row index = t*B + b)
    x2d = jnp.transpose(x, (1, 0, 2)).reshape(T * B, D)

    kernel = functools.partial(fused_model_kernel, T=T, B=B, H=H)
    y2d = pl.pallas_call(
        kernel,
        out_shape=jax.ShapeDtypeStruct((T * B, O), jnp.float32),
    )(
        x2d,
        packed["wih1"], packed["whh1"], packed["bi1"], packed["bhn1"],
        packed["fc1_w"], packed["fc1_b"],
        packed["wih2"], packed["whh2"], packed["bi2"], packed["bhn2"],
        packed["fc2_w"], packed["fc2_b"],
        packed["dir_mask"],
    )
    return jnp.transpose(y2d.reshape(T, B, O), (1, 0, 2))   # back to batch-first


# ----------------------------------------------------------------------------
# Deterministic parameter init (PyTorch-style uniform(-1/sqrt(H), 1/sqrt(H)))
# ----------------------------------------------------------------------------
def init_gru_params(key, input_dim, hidden_dim):
    bound = 1.0 / jnp.sqrt(hidden_dim)
    ks = jax.random.split(key, 8)
    u = lambda k, shape: jax.random.uniform(k, shape, jnp.float32, -bound, bound)
    return {
        "wih_f": u(ks[0], (input_dim, 3 * hidden_dim)),
        "whh_f": u(ks[1], (hidden_dim, 3 * hidden_dim)),
        "bih_f": u(ks[2], (1, 3 * hidden_dim)),
        "bhh_f": u(ks[3], (1, 3 * hidden_dim)),
        "wih_b": u(ks[4], (input_dim, 3 * hidden_dim)),
        "whh_b": u(ks[5], (hidden_dim, 3 * hidden_dim)),
        "bih_b": u(ks[6], (1, 3 * hidden_dim)),
        "bhh_b": u(ks[7], (1, 3 * hidden_dim)),
    }


def init_linear_params(key, fin, fout):
    bound = 1.0 / jnp.sqrt(fin)
    k1, k2 = jax.random.split(key)
    w = jax.random.uniform(k1, (fin, fout), jnp.float32, -bound, bound)
    b = jax.random.uniform(k2, (1, fout), jnp.float32, -bound, bound)
    return w, b


# ----------------------------------------------------------------------------
# Pure-JAX reference (lax.scan) for a correctness sanity check
# ----------------------------------------------------------------------------
def ref_gru_dir(x_tm, wih, whh, bih, bhh, reverse):
    T, B, _ = x_tm.shape
    H = whh.shape[0]
    xs = x_tm[::-1] if reverse else x_tm

    def step(h, x):
        gi = x @ wih + bih
        gh = h @ whh + bhh
        r = jax.nn.sigmoid(gi[:, :H] + gh[:, :H])
        z = jax.nn.sigmoid(gi[:, H:2 * H] + gh[:, H:2 * H])
        n = jnp.tanh(gi[:, 2 * H:] + r * gh[:, 2 * H:])
        h_new = (1.0 - z) * n + z * h
        return h_new, h_new

    _, hs = lax.scan(step, jnp.zeros((B, H), jnp.float32), xs)
    return hs[::-1] if reverse else hs


def ref_forward(x, params):
    xt = jnp.transpose(x, (1, 0, 2))
    p = params["rnn1"]
    o1 = jnp.concatenate([
        ref_gru_dir(xt, p["wih_f"], p["whh_f"], p["bih_f"], p["bhh_f"], False),
        ref_gru_dir(xt, p["wih_b"], p["whh_b"], p["bih_b"], p["bhh_b"], True)], -1)
    h1 = jnp.maximum(o1 @ params["fc1_w"] + params["fc1_b"], 0.0)
    p = params["rnn2"]
    o2 = jnp.concatenate([
        ref_gru_dir(h1, p["wih_f"], p["whh_f"], p["bih_f"], p["bhh_f"], False),
        ref_gru_dir(h1, p["wih_b"], p["whh_b"], p["bih_b"], p["bhh_b"], True)], -1)
    y = jnp.maximum(o2 @ params["fc2_w"] + params["fc2_b"], 0.0)
    return jnp.transpose(y, (1, 0, 2))


# ----------------------------------------------------------------------------
if __name__ == "__main__":
    # Small shapes consistent with the module interface (2B == 8 sublanes).
    batch, seq_len, input_dim, hidden_dim, out_dim = 4, 5, 8, 32, 4

    root = jax.random.PRNGKey(0)
    k_x, k_r1, k_r2, k_f1, k_f2 = jax.random.split(root, 5)

    x = jax.random.normal(k_x, (batch, seq_len, input_dim), jnp.float32)

    fc1_w, fc1_b = init_linear_params(k_f1, 2 * hidden_dim, 2 * hidden_dim)
    fc2_w, fc2_b = init_linear_params(k_f2, 2 * hidden_dim, out_dim)
    params = {
        "rnn1": init_gru_params(k_r1, input_dim, hidden_dim),
        "rnn2": init_gru_params(k_r2, 2 * hidden_dim, hidden_dim),
        "fc1_w": fc1_w, "fc1_b": fc1_b,
        "fc2_w": fc2_w, "fc2_b": fc2_b,
    }

    packed = pack_params(params, batch)        # one-time, outside jit

    out = jax.block_until_ready(model_forward(x, packed))
    assert out.shape == (batch, seq_len, out_dim), out.shape

    ref = jax.block_until_ready(ref_forward(x, params))
    assert jnp.allclose(out, ref, atol=1e-4, rtol=1e-4), "mismatch vs reference"

    print("KERNEL_OK")
</pallas_src>

<mosaic_0001>
module attributes {stable_mosaic.version = 11 : i64} {
  func.func @fused_model_kernel(%arg0: memref<20x8xf32, #tpu.memory_space<vmem>>, %arg1: memref<8x192xf32, #tpu.memory_space<vmem>>, %arg2: memref<64x96xf32, #tpu.memory_space<vmem>>, %arg3: memref<1x192xf32, #tpu.memory_space<vmem>>, %arg4: memref<8x32xf32, #tpu.memory_space<vmem>>, %arg5: memref<64x64xf32, #tpu.memory_space<vmem>>, %arg6: memref<1x64xf32, #tpu.memory_space<vmem>>, %arg7: memref<64x192xf32, #tpu.memory_space<vmem>>, %arg8: memref<64x96xf32, #tpu.memory_space<vmem>>, %arg9: memref<1x192xf32, #tpu.memory_space<vmem>>, %arg10: memref<8x32xf32, #tpu.memory_space<vmem>>, %arg11: memref<64x4xf32, #tpu.memory_space<vmem>>, %arg12: memref<1x4xf32, #tpu.memory_space<vmem>>, %arg13: memref<8x64xf32, #tpu.memory_space<vmem>>, %arg14: memref<20x4xf32, #tpu.memory_space<vmem>>) attributes {dimension_semantics = [], scalar_prefetch = 0 : i64, scratch_operands = 0 : i64, tpu.core_type = #tpu.core_type<tc>} {
    %c0 = arith.constant 0 : index
    %c0_0 = arith.constant 0 : index
    %0 = vector.load %arg13[%c0, %c0_0] : memref<8x64xf32, #tpu.memory_space<vmem>>, vector<8x64xf32>
    %c0_1 = arith.constant 0 : index
    %c0_2 = arith.constant 0 : index
    %1 = vector.load %arg0[%c0_1, %c0_2] : memref<20x8xf32, #tpu.memory_space<vmem>>, vector<20x8xf32>
    %c0_3 = arith.constant 0 : index
    %c0_4 = arith.constant 0 : index
    %2 = vector.load %arg1[%c0_3, %c0_4] : memref<8x192xf32, #tpu.memory_space<vmem>>, vector<8x192xf32>
    %c0_5 = arith.constant 0 : index
    %c0_6 = arith.constant 0 : index
    %3 = vector.load %arg3[%c0_5, %c0_6] : memref<1x192xf32, #tpu.memory_space<vmem>>, vector<1x192xf32>
    %c0_7 = arith.constant 0 : index
    %c0_8 = arith.constant 0 : index
    %4 = vector.load %arg2[%c0_7, %c0_8] : memref<64x96xf32, #tpu.memory_space<vmem>>, vector<64x96xf32>
    %c0_9 = arith.constant 0 : index
    %c0_10 = arith.constant 0 : index
    %5 = vector.load %arg4[%c0_9, %c0_10] : memref<8x32xf32, #tpu.memory_space<vmem>>, vector<8x32xf32>
    %cst = arith.constant dense<0.000000e+00> : vector<20x192xf32>
    %6 = tpu.matmul %1, %2, %cst {dimension_numbers = #tpu.dot_dimension_numbers<[1], [0], [0], [1], [0, 0, 1, 1], [], []>} : vector<20x8xf32>, vector<8x192xf32>, vector<20x192xf32> -> vector<20x192xf32>
    %7 = vector.broadcast %3 : vector<1x192xf32> to vector<20x192xf32>
    %8 = arith.addf %6, %7 : vector<20x192xf32>
    %9 = vector.extract_strided_slice %8 {offsets = [0, 0], sizes = [20, 96], strides = [1, 1]} : vector<20x192xf32> to vector<20x96xf32>
    %10 = vector.extract_strided_slice %8 {offsets = [0, 96], sizes = [20, 96], strides = [1, 1]} : vector<20x192xf32> to vector<20x96xf32>
    %11 = vector.extract_strided_slice %9 {offsets = [0, 0], sizes = [4, 96], strides = [1, 1]} : vector<20x96xf32> to vector<4x96xf32>
    %12 = vector.extract_strided_slice %10 {offsets = [16, 0], sizes = [4, 96], strides = [1, 1]} : vector<20x96xf32> to vector<4x96xf32>
    %13 = vector.extract_strided_slice %9 {offsets = [4, 0], sizes = [4, 96], strides = [1, 1]} : vector<20x96xf32> to vector<4x96xf32>
    %14 = vector.extract_strided_slice %10 {offsets = [12, 0], sizes = [4, 96], strides = [1, 1]} : vector<20x96xf32> to vector<4x96xf32>
    %15 = vector.extract_strided_slice %9 {offsets = [8, 0], sizes = [4, 96], strides = [1, 1]} : vector<20x96xf32> to vector<4x96xf32>
    %16 = vector.extract_strided_slice %10 {offsets = [8, 0], sizes = [4, 96], strides = [1, 1]} : vector<20x96xf32> to vector<4x96xf32>
    %17 = vector.extract_strided_slice %9 {offsets = [12, 0], sizes = [4, 96], strides = [1, 1]} : vector<20x96xf32> to vector<4x96xf32>
    %18 = vector.extract_strided_slice %10 {offsets = [4, 0], sizes = [4, 96], strides = [1, 1]} : vector<20x96xf32> to vector<4x96xf32>
    %19 = vector.extract_strided_slice %9 {offsets = [16, 0], sizes = [4, 96], strides = [1, 1]} : vector<20x96xf32> to vector<4x96xf32>
    %20 = vector.extract_strided_slice %10 {offsets = [0, 0], sizes = [4, 96], strides = [1, 1]} : vector<20x96xf32> to vector<4x96xf32>
    %21 = tpu.concatenate %11, %12, %13, %14, %15, %16, %17, %18, %19, %20 in 0 : vector<4x96xf32>, vector<4x96xf32>, vector<4x96xf32>, vector<4x96xf32>, vector<4x96xf32>, vector<4x96xf32>, vector<4x96xf32>, vector<4x96xf32>, vector<4x96xf32>, vector<4x96xf32> -> vector<40x96xf32>
    %cst_11 = arith.constant 0.000000e+00 : f32
    %22 = vector.broadcast %cst_11 : f32 to vector<8x32xf32>
    %23 = vector.extract_strided_slice %21 {offsets = [0, 0], sizes = [8, 96], strides = [1, 1]} : vector<40x96xf32> to vector<8x96xf32>
    %24 = tpu.concatenate %22, %22 in 1 : vector<8x32xf32>, vector<8x32xf32> -> vector<8x64xf32>
    %25 = arith.mulf %24, %0 : vector<8x64xf32>
    %cst_12 = arith.constant dense<0.000000e+00> : vector<8x96xf32>
    %26 = tpu.matmul %25, %4, %cst_12 {dimension_numbers = #tpu.dot_dimension_numbers<[1], [0], [0], [1], [0, 0, 1, 1], [], []>} : vector<8x64xf32>, vector<64x96xf32>, vector<8x96xf32> -> vector<8x96xf32>
    %27 = vector.extract_strided_slice %23 {offsets = [0, 0], sizes = [8, 64], strides = [1, 1]} : vector<8x96xf32> to vector<8x64xf32>
    %28 = vector.extract_strided_slice %26 {offsets = [0, 0], sizes = [8, 64], strides = [1, 1]} : vector<8x96xf32> to vector<8x64xf32>
    %29 = arith.addf %27, %28 : vector<8x64xf32>
    %cst_13 = arith.constant 5.000000e-01 : f32
    %30 = vector.broadcast %cst_13 : f32 to vector<8x64xf32>
    %31 = arith.mulf %30, %29 : vector<8x64xf32>
    %32 = math.tanh %31 : vector<8x64xf32>
    %cst_14 = arith.constant 5.000000e-01 : f32
    %33 = vector.broadcast %cst_14 : f32 to vector<8x64xf32>
    %34 = arith.mulf %33, %32 : vector<8x64xf32>
    %cst_15 = arith.constant 5.000000e-01 : f32
    %35 = vector.broadcast %cst_15 : f32 to vector<8x64xf32>
    %36 = arith.addf %34, %35 : vector<8x64xf32>
    %37 = vector.extract_strided_slice %36 {offsets = [0, 0], sizes = [8, 32], strides = [1, 1]} : vector<8x64xf32> to vector<8x32xf32>
    %38 = vector.extract_strided_slice %36 {offsets = [0, 32], sizes = [8, 32], strides = [1, 1]} : vector<8x64xf32> to vector<8x32xf32>
    %39 = vector.extract_strided_slice %23 {offsets = [0, 64], sizes = [8, 32], strides = [1, 1]} : vector<8x96xf32> to vector<8x32xf32>
    %40 = vector.extract_strided_slice %26 {offsets = [0, 64], sizes = [8, 32], strides = [1, 1]} : vector<8x96xf32> to vector<8x32xf32>
    %41 = arith.addf %40, %5 : vector<8x32xf32>
    %42 = arith.mulf %37, %41 : vector<8x32xf32>
    %43 = arith.addf %39, %42 : vector<8x32xf32>
    %44 = math.tanh %43 : vector<8x32xf32>
    %45 = arith.subf %22, %44 : vector<8x32xf32>
    %46 = arith.mulf %38, %45 : vector<8x32xf32>
    %47 = arith.addf %44, %46 : vector<8x32xf32>
    %48 = vector.extract_strided_slice %21 {offsets = [8, 0], sizes = [8, 96], strides = [1, 1]} : vector<40x96xf32> to vector<8x96xf32>
    %49 = tpu.concatenate %47, %47 in 1 : vector<8x32xf32>, vector<8x32xf32> -> vector<8x64xf32>
    %50 = arith.mulf %49, %0 : vector<8x64xf32>
    %cst_16 = arith.constant dense<0.000000e+00> : vector<8x96xf32>
    %51 = tpu.matmul %50, %4, %cst_16 {dimension_numbers = #tpu.dot_dimension_numbers<[1], [0], [0], [1], [0, 0, 1, 1], [], []>} : vector<8x64xf32>, vector<64x96xf32>, vector<8x96xf32> -> vector<8x96xf32>
    %52 = vector.extract_strided_slice %48 {offsets = [0, 0], sizes = [8, 64], strides = [1, 1]} : vector<8x96xf32> to vector<8x64xf32>
    %53 = vector.extract_strided_slice %51 {offsets = [0, 0], sizes = [8, 64], strides = [1, 1]} : vector<8x96xf32> to vector<8x64xf32>
    %54 = arith.addf %52, %53 : vector<8x64xf32>
    %cst_17 = arith.constant 5.000000e-01 : f32
    %55 = vector.broadcast %cst_17 : f32 to vector<8x64xf32>
    %56 = arith.mulf %55, %54 : vector<8x64xf32>
    %57 = math.tanh %56 : vector<8x64xf32>
    %cst_18 = arith.constant 5.000000e-01 : f32
    %58 = vector.broadcast %cst_18 : f32 to vector<8x64xf32>
    %59 = arith.mulf %58, %57 : vector<8x64xf32>
    %cst_19 = arith.constant 5.000000e-01 : f32
    %60 = vector.broadcast %cst_19 : f32 to vector<8x64xf32>
    %61 = arith.addf %59, %60 : vector<8x64xf32>
    %62 = vector.extract_strided_slice %61 {offsets = [0, 0], sizes = [8, 32], strides = [1, 1]} : vector<8x64xf32> to vector<8x32xf32>
    %63 = vector.extract_strided_slice %61 {offsets = [0, 32], sizes = [8, 32], strides = [1, 1]} : vector<8x64xf32> to vector<8x32xf32>
    %64 = vector.extract_strided_slice %48 {offsets = [0, 64], sizes = [8, 32], strides = [1, 1]} : vector<8x96xf32> to vector<8x32xf32>
    %65 = vector.extract_strided_slice %51 {offsets = [0, 64], sizes = [8, 32], strides = [1, 1]} : vector<8x96xf32> to vector<8x32xf32>
    %66 = arith.addf %65, %5 : vector<8x32xf32>
    %67 = arith.mulf %62, %66 : vector<8x32xf32>
    %68 = arith.addf %64, %67 : vector<8x32xf32>
    %69 = math.tanh %68 : vector<8x32xf32>
    %70 = arith.subf %47, %69 : vector<8x32xf32>
    %71 = arith.mulf %63, %70 : vector<8x32xf32>
    %72 = arith.addf %69, %71 : vector<8x32xf32>
    %73 = vector.extract_strided_slice %21 {offsets = [16, 0], sizes = [8, 96], strides = [1, 1]} : vector<40x96xf32> to vector<8x96xf32>
    %74 = tpu.concatenate %72, %72 in 1 : vector<8x32xf32>, vector<8x32xf32> -> vector<8x64xf32>
    %75 = arith.mulf %74, %0 : vector<8x64xf32>
    %cst_20 = arith.constant dense<0.000000e+00> : vector<8x96xf32>
    %76 = tpu.matmul %75, %4, %cst_20 {dimension_numbers = #tpu.dot_dimension_numbers<[1], [0], [0], [1], [0, 0, 1, 1], [], []>} : vector<8x64xf32>, vector<64x96xf32>, vector<8x96xf32> -> vector<8x96xf32>
    %77 = vector.extract_strided_slice %73 {offsets = [0, 0], sizes = [8, 64], strides = [1, 1]} : vector<8x96xf32> to vector<8x64xf32>
    %78 = vector.extract_strided_slice %76 {offsets = [0, 0], sizes = [8, 64], strides = [1, 1]} : vector<8x96xf32> to vector<8x64xf32>
    %79 = arith.addf %77, %78 : vector<8x64xf32>
    %cst_21 = arith.constant 5.000000e-01 : f32
    %80 = vector.broadcast %cst_21 : f32 to vector<8x64xf32>
    %81 = arith.mulf %80, %79 : vector<8x64xf32>
    %82 = math.tanh %81 : vector<8x64xf32>
    %cst_22 = arith.constant 5.000000e-01 : f32
    %83 = vector.broadcast %cst_22 : f32 to vector<8x64xf32>
    %84 = arith.mulf %83, %82 : vector<8x64xf32>
    %cst_23 = arith.constant 5.000000e-01 : f32
    %85 = vector.broadcast %cst_23 : f32 to vector<8x64xf32>
    %86 = arith.addf %84, %85 : vector<8x64xf32>
    %87 = vector.extract_strided_slice %86 {offsets = [0, 0], sizes = [8, 32], strides = [1, 1]} : vector<8x64xf32> to vector<8x32xf32>
    %88 = vector.extract_strided_slice %86 {offsets = [0, 32], sizes = [8, 32], strides = [1, 1]} : vector<8x64xf32> to vector<8x32xf32>
    %89 = vector.extract_strided_slice %73 {offsets = [0, 64], sizes = [8, 32], strides = [1, 1]} : vector<8x96xf32> to vector<8x32xf32>
    %90 = vector.extract_strided_slice %76 {offsets = [0, 64], sizes = [8, 32], strides = [1, 1]} : vector<8x96xf32> to vector<8x32xf32>
    %91 = arith.addf %90, %5 : vector<8x32xf32>
    %92 = arith.mulf %87, %91 : vector<8x32xf32>
    %93 = arith.addf %89, %92 : vector<8x32xf32>
    %94 = math.tanh %93 : vector<8x32xf32>
    %95 = arith.subf %72, %94 : vector<8x32xf32>
    %96 = arith.mulf %88, %95 : vector<8x32xf32>
    %97 = arith.addf %94, %96 : vector<8x32xf32>
    %98 = vector.extract_strided_slice %21 {offsets = [24, 0], sizes = [8, 96], strides = [1, 1]} : vector<40x96xf32> to vector<8x96xf32>
    %99 = tpu.concatenate %97, %97 in 1 : vector<8x32xf32>, vector<8x32xf32> -> vector<8x64xf32>
    %100 = arith.mulf %99, %0 : vector<8x64xf32>
    %cst_24 = arith.constant dense<0.000000e+00> : vector<8x96xf32>
    %101 = tpu.matmul %100, %4, %cst_24 {dimension_numbers = #tpu.dot_dimension_numbers<[1], [0], [0], [1], [0, 0, 1, 1], [], []>} : vector<8x64xf32>, vector<64x96xf32>, vector<8x96xf32> -> vector<8x96xf32>
    %102 = vector.extract_strided_slice %98 {offsets = [0, 0], sizes = [8, 64], strides = [1, 1]} : vector<8x96xf32> to vector<8x64xf32>
    %103 = vector.extract_strided_slice %101 {offsets = [0, 0], sizes = [8, 64], strides = [1, 1]} : vector<8x96xf32> to vector<8x64xf32>
    %104 = arith.addf %102, %103 : vector<8x64xf32>
    %cst_25 = arith.constant 5.000000e-01 : f32
    %105 = vector.broadcast %cst_25 : f32 to vector<8x64xf32>
    %106 = arith.mulf %105, %104 : vector<8x64xf32>
    %107 = math.tanh %106 : vector<8x64xf32>
    %cst_26 = arith.constant 5.000000e-01 : f32
    %108 = vector.broadcast %cst_26 : f32 to vector<8x64xf32>
    %109 = arith.mulf %108, %107 : vector<8x64xf32>
    %cst_27 = arith.constant 5.000000e-01 : f32
    %110 = vector.broadcast %cst_27 : f32 to vector<8x64xf32>
    %111 = arith.addf %109, %110 : vector<8x64xf32>
    %112 = vector.extract_strided_slice %111 {offsets = [0, 0], sizes = [8, 32], strides = [1, 1]} : vector<8x64xf32> to vector<8x32xf32>
    %113 = vector.extract_strided_slice %111 {offsets = [0, 32], sizes = [8, 32], strides = [1, 1]} : vector<8x64xf32> to vector<8x32xf32>
    %114 = vector.extract_strided_slice %98 {offsets = [0, 64], sizes = [8, 32], strides = [1, 1]} : vector<8x96xf32> to vector<8x32xf32>
    %115 = vector.extract_strided_slice %101 {offsets = [0, 64], sizes = [8, 32], strides = [1, 1]} : vector<8x96xf32> to vector<8x32xf32>
    %116 = arith.addf %115, %5 : vector<8x32xf32>
    %117 = arith.mulf %112, %116 : vector<8x32xf32>
    %118 = arith.addf %114, %117 : vector<8x32xf32>
    %119 = math.tanh %118 : vector<8x32xf32>
    %120 = arith.subf %97, %119 : vector<8x32xf32>
    %121 = arith.mulf %113, %120 : vector<8x32xf32>
    %122 = arith.addf %119, %121 : vector<8x32xf32>
    %123 = vector.extract_strided_slice %21 {offsets = [32, 0], sizes = [8, 96], strides = [1, 1]} : vector<40x96xf32> to vector<8x96xf32>
    %124 = tpu.concatenate %122, %122 in 1 : vector<8x32xf32>, vector<8x32xf32> -> vector<8x64xf32>
    %125 = arith.mulf %124, %0 : vector<8x64xf32>
    %cst_28 = arith.constant dense<0.000000e+00> : vector<8x96xf32>
    %126 = tpu.matmul %125, %4, %cst_28 {dimension_numbers = #tpu.dot_dimension_numbers<[1], [0], [0], [1], [0, 0, 1, 1], [], []>} : vector<8x64xf32>, vector<64x96xf32>, vector<8x96xf32> -> vector<8x96xf32>
    %127 = vector.extract_strided_slice %123 {offsets = [0, 0], sizes = [8, 64], strides = [1, 1]} : vector<8x96xf32> to vector<8x64xf32>
    %128 = vector.extract_strided_slice %126 {offsets = [0, 0], sizes = [8, 64], strides = [1, 1]} : vector<8x96xf32> to vector<8x64xf32>
    %129 = arith.addf %127, %128 : vector<8x64xf32>
    %cst_29 = arith.constant 5.000000e-01 : f32
    %130 = vector.broadcast %cst_29 : f32 to vector<8x64xf32>
    %131 = arith.mulf %130, %129 : vector<8x64xf32>
    %132 = math.tanh %131 : vector<8x64xf32>
    %cst_30 = arith.constant 5.000000e-01 : f32
    %133 = vector.broadcast %cst_30 : f32 to vector<8x64xf32>
    %134 = arith.mulf %133, %132 : vector<8x64xf32>
    %cst_31 = arith.constant 5.000000e-01 : f32
    %135 = vector.broadcast %cst_31 : f32 to vector<8x64xf32>
    %136 = arith.addf %134, %135 : vector<8x64xf32>
    %137 = vector.extract_strided_slice %136 {offsets = [0, 0], sizes = [8, 32], strides = [1, 1]} : vector<8x64xf32> to vector<8x32xf32>
    %138 = vector.extract_strided_slice %136 {offsets = [0, 32], sizes = [8, 32], strides = [1, 1]} : vector<8x64xf32> to vector<8x32xf32>
    %139 = vector.extract_strided_slice %123 {offsets = [0, 64], sizes = [8, 32], strides = [1, 1]} : vector<8x96xf32> to vector<8x32xf32>
    %140 = vector.extract_strided_slice %126 {offsets = [0, 64], sizes = [8, 32], strides = [1, 1]} : vector<8x96xf32> to vector<8x32xf32>
    %141 = arith.addf %140, %5 : vector<8x32xf32>
    %142 = arith.mulf %137, %141 : vector<8x32xf32>
    %143 = arith.addf %139, %142 : vector<8x32xf32>
    %144 = math.tanh %143 : vector<8x32xf32>
    %145 = arith.subf %122, %144 : vector<8x32xf32>
    %146 = arith.mulf %138, %145 : vector<8x32xf32>
    %147 = arith.addf %144, %146 : vector<8x32xf32>
    %148 = vector.extract_strided_slice %47 {offsets = [0, 0], sizes = [4, 32], strides = [1, 1]} : vector<8x32xf32> to vector<4x32xf32>
    %149 = vector.extract_strided_slice %147 {offsets = [4, 0], sizes = [4, 32], strides = [1, 1]} : vector<8x32xf32> to vector<4x32xf32>
    %150 = tpu.concatenate %148, %149 in 1 : vector<4x32xf32>, vector<4x32xf32> -> vector<4x64xf32>
    %151 = vector.extract_strided_slice %72 {offsets = [0, 0], sizes = [4, 32], strides = [1, 1]} : vector<8x32xf32> to vector<4x32xf32>
    %152 = vector.extract_strided_slice %122 {offsets = [4, 0], sizes = [4, 32], strides = [1, 1]} : vector<8x32xf32> to vector<4x32xf32>
    %153 = tpu.concatenate %151, %152 in 1 : vector<4x32xf32>, vector<4x32xf32> -> vector<4x64xf32>
    %154 = vector.extract_strided_slice %97 {offsets = [0, 0], sizes = [4, 32], strides = [1, 1]} : vector<8x32xf32> to vector<4x32xf32>
    %155 = vector.extract_strided_slice %97 {offsets = [4, 0], sizes = [4, 32], strides = [1, 1]} : vector<8x32xf32> to vector<4x32xf32>
    %156 = tpu.concatenate %154, %155 in 1 : vector<4x32xf32>, vector<4x32xf32> -> vector<4x64xf32>
    %157 = vector.extract_strided_slice %122 {offsets = [0, 0], sizes = [4, 32], strides = [1, 1]} : vector<8x32xf32> to vector<4x32xf32>
    %158 = vector.extract_strided_slice %72 {offsets = [4, 0], sizes = [4, 32], strides = [1, 1]} : vector<8x32xf32> to vector<4x32xf32>
    %159 = tpu.concatenate %157, %158 in 1 : vector<4x32xf32>, vector<4x32xf32> -> vector<4x64xf32>
    %160 = vector.extract_strided_slice %147 {offsets = [0, 0], sizes = [4, 32], strides = [1, 1]} : vector<8x32xf32> to vector<4x32xf32>
    %161 = vector.extract_strided_slice %47 {offsets = [4, 0], sizes = [4, 32], strides = [1, 1]} : vector<8x32xf32> to vector<4x32xf32>
    %162 = tpu.concatenate %160, %161 in 1 : vector<4x32xf32>, vector<4x32xf32> -> vector<4x64xf32>
    %163 = tpu.concatenate %150, %153, %156, %159, %162 in 0 : vector<4x64xf32>, vector<4x64xf32>, vector<4x64xf32>, vector<4x64xf32>, vector<4x64xf32> -> vector<20x64xf32>
    %c0_32 = arith.constant 0 : index
    %c0_33 = arith.constant 0 : index
    %164 = vector.load %arg5[%c0_32, %c0_33] : memref<64x64xf32, #tpu.memory_space<vmem>>, vector<64x64xf32>
    %cst_34 = arith.constant dense<0.000000e+00> : vector<20x64xf32>
    %165 = tpu.matmul %163, %164, %cst_34 {dimension_numbers = #tpu.dot_dimension_numbers<[1], [0], [0], [1], [0, 0, 1, 1], [], []>} : vector<20x64xf32>, vector<64x64xf32>, vector<20x64xf32> -> vector<20x64xf32>
    %c0_35 = arith.constant 0 : index
    %c0_36 = arith.constant 0 : index
    %166 = vector.load %arg6[%c0_35, %c0_36] : memref<1x64xf32, #tpu.memory_space<vmem>>, vector<1x64xf32>
    %167 = vector.broadcast %166 : vector<1x64xf32> to vector<20x64xf32>
    %168 = arith.addf %165, %167 : vector<20x64xf32>
    %cst_37 = arith.constant 0.000000e+00 : f32
    %169 = vector.broadcast %cst_37 : f32 to vector<20x64xf32>
    %170 = arith.maximumf %168, %169 : vector<20x64xf32>
    %c0_38 = arith.constant 0 : index
    %c0_39 = arith.constant 0 : index
    %171 = vector.load %arg7[%c0_38, %c0_39] : memref<64x192xf32, #tpu.memory_space<vmem>>, vector<64x192xf32>
    %c0_40 = arith.constant 0 : index
    %c0_41 = arith.constant 0 : index
    %172 = vector.load %arg9[%c0_40, %c0_41] : memref<1x192xf32, #tpu.memory_space<vmem>>, vector<1x192xf32>
    %c0_42 = arith.constant 0 : index
    %c0_43 = arith.constant 0 : index
    %173 = vector.load %arg8[%c0_42, %c0_43] : memref<64x96xf32, #tpu.memory_space<vmem>>, vector<64x96xf32>
    %c0_44 = arith.constant 0 : index
    %c0_45 = arith.constant 0 : index
    %174 = vector.load %arg10[%c0_44, %c0_45] : memref<8x32xf32, #tpu.memory_space<vmem>>, vector<8x32xf32>
    %cst_46 = arith.constant dense<0.000000e+00> : vector<20x192xf32>
    %175 = tpu.matmul %170, %171, %cst_46 {dimension_numbers = #tpu.dot_dimension_numbers<[1], [0], [0], [1], [0, 0, 1, 1], [], []>} : vector<20x64xf32>, vector<64x192xf32>, vector<20x192xf32> -> vector<20x192xf32>
    %176 = vector.broadcast %172 : vector<1x192xf32> to vector<20x192xf32>
    %177 = arith.addf %175, %176 : vector<20x192xf32>
    %178 = vector.extract_strided_slice %177 {offsets = [0, 0], sizes = [20, 96], strides = [1, 1]} : vector<20x192xf32> to vector<20x96xf32>
    %179 = vector.extract_strided_slice %177 {offsets = [0, 96], sizes = [20, 96], strides = [1, 1]} : vector<20x192xf32> to vector<20x96xf32>
    %180 = vector.extract_strided_slice %178 {offsets = [0, 0], sizes = [4, 96], strides = [1, 1]} : vector<20x96xf32> to vector<4x96xf32>
    %181 = vector.extract_strided_slice %179 {offsets = [16, 0], sizes = [4, 96], strides = [1, 1]} : vector<20x96xf32> to vector<4x96xf32>
    %182 = vector.extract_strided_slice %178 {offsets = [4, 0], sizes = [4, 96], strides = [1, 1]} : vector<20x96xf32> to vector<4x96xf32>
    %183 = vector.extract_strided_slice %179 {offsets = [12, 0], sizes = [4, 96], strides = [1, 1]} : vector<20x96xf32> to vector<4x96xf32>
    %184 = vector.extract_strided_slice %178 {offsets = [8, 0], sizes = [4, 96], strides = [1, 1]} : vector<20x96xf32> to vector<4x96xf32>
    %185 = vector.extract_strided_slice %179 {offsets = [8, 0], sizes = [4, 96], strides = [1, 1]} : vector<20x96xf32> to vector<4x96xf32>
    %186 = vector.extract_strided_slice %178 {offsets = [12, 0], sizes = [4, 96], strides = [1, 1]} : vector<20x96xf32> to vector<4x96xf32>
    %187 = vector.extract_strided_slice %179 {offsets = [4, 0], sizes = [4, 96], strides = [1, 1]} : vector<20x96xf32> to vector<4x96xf32>
    %188 = vector.extract_strided_slice %178 {offsets = [16, 0], sizes = [4, 96], strides = [1, 1]} : vector<20x96xf32> to vector<4x96xf32>
    %189 = vector.extract_strided_slice %179 {offsets = [0, 0], sizes = [4, 96], strides = [1, 1]} : vector<20x96xf32> to vector<4x96xf32>
    %190 = tpu.concatenate %180, %181, %182, %183, %184, %185, %186, %187, %188, %189 in 0 : vector<4x96xf32>, vector<4x96xf32>, vector<4x96xf32>, vector<4x96xf32>, vector<4x96xf32>, vector<4x96xf32>, vector<4x96xf32>, vector<4x96xf32>, vector<4x96xf32>, vector<4x96xf32> -> vector<40x96xf32>
    %cst_47 = arith.constant 0.000000e+00 : f32
    %191 = vector.broadcast %cst_47 : f32 to vector<8x32xf32>
    %192 = vector.extract_strided_slice %190 {offsets = [0, 0], sizes = [8, 96], strides = [1, 1]} : vector<40x96xf32> to vector<8x96xf32>
    %193 = tpu.concatenate %191, %191 in 1 : vector<8x32xf32>, vector<8x32xf32> -> vector<8x64xf32>
    %194 = arith.mulf %193, %0 : vector<8x64xf32>
    %cst_48 = arith.constant dense<0.000000e+00> : vector<8x96xf32>
    %195 = tpu.matmul %194, %173, %cst_48 {dimension_numbers = #tpu.dot_dimension_numbers<[1], [0], [0], [1], [0, 0, 1, 1], [], []>} : vector<8x64xf32>, vector<64x96xf32>, vector<8x96xf32> -> vector<8x96xf32>
    %196 = vector.extract_strided_slice %192 {offsets = [0, 0], sizes = [8, 64], strides = [1, 1]} : vector<8x96xf32> to vector<8x64xf32>
    %197 = vector.extract_strided_slice %195 {offsets = [0, 0], sizes = [8, 64], strides = [1, 1]} : vector<8x96xf32> to vector<8x64xf32>
    %198 = arith.addf %196, %197 : vector<8x64xf32>
    %cst_49 = arith.constant 5.000000e-01 : f32
    %199 = vector.broadcast %cst_49 : f32 to vector<8x64xf32>
    %200 = arith.mulf %199, %198 : vector<8x64xf32>
    %201 = math.tanh %200 : vector<8x64xf32>
    %cst_50 = arith.constant 5.000000e-01 : f32
    %202 = vector.broadcast %cst_50 : f32 to vector<8x64xf32>
    %203 = arith.mulf %202, %201 : vector<8x64xf32>
    %cst_51 = arith.constant 5.000000e-01 : f32
    %204 = vector.broadcast %cst_51 : f32 to vector<8x64xf32>
    %205 = arith.addf %203, %204 : vector<8x64xf32>
    %206 = vector.extract_strided_slice %205 {offsets = [0, 0], sizes = [8, 32], strides = [1, 1]} : vector<8x64xf32> to vector<8x32xf32>
    %207 = vector.extract_strided_slice %205 {offsets = [0, 32], sizes = [8, 32], strides = [1, 1]} : vector<8x64xf32> to vector<8x32xf32>
    %208 = vector.extract_strided_slice %192 {offsets = [0, 64], sizes = [8, 32], strides = [1, 1]} : vector<8x96xf32> to vector<8x32xf32>
    %209 = vector.extract_strided_slice %195 {offsets = [0, 64], sizes = [8, 32], strides = [1, 1]} : vector<8x96xf32> to vector<8x32xf32>
    %210 = arith.addf %209, %174 : vector<8x32xf32>
    %211 = arith.mulf %206, %210 : vector<8x32xf32>
    %212 = arith.addf %208, %211 : vector<8x32xf32>
    %213 = math.tanh %212 : vector<8x32xf32>
    %214 = arith.subf %191, %213 : vector<8x32xf32>
    %215 = arith.mulf %207, %214 : vector<8x32xf32>
    %216 = arith.addf %213, %215 : vector<8x32xf32>
    %217 = vector.extract_strided_slice %190 {offsets = [8, 0], sizes = [8, 96], strides = [1, 1]} : vector<40x96xf32> to vector<8x96xf32>
    %218 = tpu.concatenate %216, %216 in 1 : vector<8x32xf32>, vector<8x32xf32> -> vector<8x64xf32>
    %219 = arith.mulf %218, %0 : vector<8x64xf32>
    %cst_52 = arith.constant dense<0.000000e+00> : vector<8x96xf32>
    %220 = tpu.matmul %219, %173, %cst_52 {dimension_numbers = #tpu.dot_dimension_numbers<[1], [0], [0], [1], [0, 0, 1, 1], [], []>} : vector<8x64xf32>, vector<64x96xf32>, vector<8x96xf32> -> vector<8x96xf32>
    %221 = vector.extract_strided_slice %217 {offsets = [0, 0], sizes = [8, 64], strides = [1, 1]} : vector<8x96xf32> to vector<8x64xf32>
    %222 = vector.extract_strided_slice %220 {offsets = [0, 0], sizes = [8, 64], strides = [1, 1]} : vector<8x96xf32> to vector<8x64xf32>
    %223 = arith.addf %221, %222 : vector<8x64xf32>
    %cst_53 = arith.constant 5.000000e-01 : f32
    %224 = vector.broadcast %cst_53 : f32 to vector<8x64xf32>
    %225 = arith.mulf %224, %223 : vector<8x64xf32>
    %226 = math.tanh %225 : vector<8x64xf32>
    %cst_54 = arith.constant 5.000000e-01 : f32
    %227 = vector.broadcast %cst_54 : f32 to vector<8x64xf32>
    %228 = arith.mulf %227, %226 : vector<8x64xf32>
    %cst_55 = arith.constant 5.000000e-01 : f32
    %229 = vector.broadcast %cst_55 : f32 to vector<8x64xf32>
    %230 = arith.addf %228, %229 : vector<8x64xf32>
    %231 = vector.extract_strided_slice %230 {offsets = [0, 0], sizes = [8, 32], strides = [1, 1]} : vector<8x64xf32> to vector<8x32xf32>
    %232 = vector.extract_strided_slice %230 {offsets = [0, 32], sizes = [8, 32], strides = [1, 1]} : vector<8x64xf32> to vector<8x32xf32>
    %233 = vector.extract_strided_slice %217 {offsets = [0, 64], sizes = [8, 32], strides = [1, 1]} : vector<8x96xf32> to vector<8x32xf32>
    %234 = vector.extract_strided_slice %220 {offsets = [0, 64], sizes = [8, 32], strides = [1, 1]} : vector<8x96xf32> to vector<8x32xf32>
    %235 = arith.addf %234, %174 : vector<8x32xf32>
    %236 = arith.mulf %231, %235 : vector<8x32xf32>
    %237 = arith.addf %233, %236 : vector<8x32xf32>
    %238 = math.tanh %237 : vector<8x32xf32>
    %239 = arith.subf %216, %238 : vector<8x32xf32>
    %240 = arith.mulf %232, %239 : vector<8x32xf32>
    %241 = arith.addf %238, %240 : vector<8x32xf32>
    %242 = vector.extract_strided_slice %190 {offsets = [16, 0], sizes = [8, 96], strides = [1, 1]} : vector<40x96xf32> to vector<8x96xf32>
    %243 = tpu.concatenate %241, %241 in 1 : vector<8x32xf32>, vector<8x32xf32> -> vector<8x64xf32>
    %244 = arith.mulf %243, %0 : vector<8x64xf32>
    %cst_56 = arith.constant dense<0.000000e+00> : vector<8x96xf32>
    %245 = tpu.matmul %244, %173, %cst_56 {dimension_numbers = #tpu.dot_dimension_numbers<[1], [0], [0], [1], [0, 0, 1, 1], [], []>} : vector<8x64xf32>, vector<64x96xf32>, vector<8x96xf32> -> vector<8x96xf32>
    %246 = vector.extract_strided_slice %242 {offsets = [0, 0], sizes = [8, 64], strides = [1, 1]} : vector<8x96xf32> to vector<8x64xf32>
    %247 = vector.extract_strided_slice %245 {offsets = [0, 0], sizes = [8, 64], strides = [1, 1]} : vector<8x96xf32> to vector<8x64xf32>
    %248 = arith.addf %246, %247 : vector<8x64xf32>
    %cst_57 = arith.constant 5.000000e-01 : f32
    %249 = vector.broadcast %cst_57 : f32 to vector<8x64xf32>
    %250 = arith.mulf %249, %248 : vector<8x64xf32>
    %251 = math.tanh %250 : vector<8x64xf32>
    %cst_58 = arith.constant 5.000000e-01 : f32
    %252 = vector.broadcast %cst_58 : f32 to vector<8x64xf32>
    %253 = arith.mulf %252, %251 : vector<8x64xf32>
    %cst_59 = arith.constant 5.000000e-01 : f32
    %254 = vector.broadcast %cst_59 : f32 to vector<8x64xf32>
    %255 = arith.addf %253, %254 : vector<8x64xf32>
    %256 = vector.extract_strided_slice %255 {offsets = [0, 0], sizes = [8, 32], strides = [1, 1]} : vector<8x64xf32> to vector<8x32xf32>
    %257 = vector.extract_strided_slice %255 {offsets = [0, 32], sizes = [8, 32], strides = [1, 1]} : vector<8x64xf32> to vector<8x32xf32>
    %258 = vector.extract_strided_slice %242 {offsets = [0, 64], sizes = [8, 32], strides = [1, 1]} : vector<8x96xf32> to vector<8x32xf32>
    %259 = vector.extract_strided_slice %245 {offsets = [0, 64], sizes = [8, 32], strides = [1, 1]} : vector<8x96xf32> to vector<8x32xf32>
    %260 = arith.addf %259, %174 : vector<8x32xf32>
    %261 = arith.mulf %256, %260 : vector<8x32xf32>
    %262 = arith.addf %258, %261 : vector<8x32xf32>
    %263 = math.tanh %262 : vector<8x32xf32>
    %264 = arith.subf %241, %263 : vector<8x32xf32>
    %265 = arith.mulf %257, %264 : vector<8x32xf32>
    %266 = arith.addf %263, %265 : vector<8x32xf32>
    %267 = vector.extract_strided_slice %190 {offsets = [24, 0], sizes = [8, 96], strides = [1, 1]} : vector<40x96xf32> to vector<8x96xf32>
    %268 = tpu.concatenate %266, %266 in 1 : vector<8x32xf32>, vector<8x32xf32> -> vector<8x64xf32>
    %269 = arith.mulf %268, %0 : vector<8x64xf32>
    %cst_60 = arith.constant dense<0.000000e+00> : vector<8x96xf32>
    %270 = tpu.matmul %269, %173, %cst_60 {dimension_numbers = #tpu.dot_dimension_numbers<[1], [0], [0], [1], [0, 0, 1, 1], [], []>} : vector<8x64xf32>, vector<64x96xf32>, vector<8x96xf32> -> vector<8x96xf32>
    %271 = vector.extract_strided_slice %267 {offsets = [0, 0], sizes = [8, 64], strides = [1, 1]} : vector<8x96xf32> to vector<8x64xf32>
    %272 = vector.extract_strided_slice %270 {offsets = [0, 0], sizes = [8, 64], strides = [1, 1]} : vector<8x96xf32> to vector<8x64xf32>
    %273 = arith.addf %271, %272 : vector<8x64xf32>
    %cst_61 = arith.constant 5.000000e-01 : f32
    %274 = vector.broadcast %cst_61 : f32 to vector<8x64xf32>
    %275 = arith.mulf %274, %273 : vector<8x64xf32>
    %276 = math.tanh %275 : vector<8x64xf32>
    %cst_62 = arith.constant 5.000000e-01 : f32
    %277 = vector.broadcast %cst_62 : f32 to vector<8x64xf32>
    %278 = arith.mulf %277, %276 : vector<8x64xf32>
    %cst_63 = arith.constant 5.000000e-01 : f32
    %279 = vector.broadcast %cst_63 : f32 to vector<8x64xf32>
    %280 = arith.addf %278, %279 : vector<8x64xf32>
    %281 = vector.extract_strided_slice %280 {offsets = [0, 0], sizes = [8, 32], strides = [1, 1]} : vector<8x64xf32> to vector<8x32xf32>
    %282 = vector.extract_strided_slice %280 {offsets = [0, 32], sizes = [8, 32], strides = [1, 1]} : vector<8x64xf32> to vector<8x32xf32>
    %283 = vector.extract_strided_slice %267 {offsets = [0, 64], sizes = [8, 32], strides = [1, 1]} : vector<8x96xf32> to vector<8x32xf32>
    %284 = vector.extract_strided_slice %270 {offsets = [0, 64], sizes = [8, 32], strides = [1, 1]} : vector<8x96xf32> to vector<8x32xf32>
    %285 = arith.addf %284, %174 : vector<8x32xf32>
    %286 = arith.mulf %281, %285 : vector<8x32xf32>
    %287 = arith.addf %283, %286 : vector<8x32xf32>
    %288 = math.tanh %287 : vector<8x32xf32>
    %289 = arith.subf %266, %288 : vector<8x32xf32>
    %290 = arith.mulf %282, %289 : vector<8x32xf32>
    %291 = arith.addf %288, %290 : vector<8x32xf32>
    %292 = vector.extract_strided_slice %190 {offsets = [32, 0], sizes = [8, 96], strides = [1, 1]} : vector<40x96xf32> to vector<8x96xf32>
    %293 = tpu.concatenate %291, %291 in 1 : vector<8x32xf32>, vector<8x32xf32> -> vector<8x64xf32>
    %294 = arith.mulf %293, %0 : vector<8x64xf32>
    %cst_64 = arith.constant dense<0.000000e+00> : vector<8x96xf32>
    %295 = tpu.matmul %294, %173, %cst_64 {dimension_numbers = #tpu.dot_dimension_numbers<[1], [0], [0], [1], [0, 0, 1, 1], [], []>} : vector<8x64xf32>, vector<64x96xf32>, vector<8x96xf32> -> vector<8x96xf32>
    %296 = vector.extract_strided_slice %292 {offsets = [0, 0], sizes = [8, 64], strides = [1, 1]} : vector<8x96xf32> to vector<8x64xf32>
    %297 = vector.extract_strided_slice %295 {offsets = [0, 0], sizes = [8, 64], strides = [1, 1]} : vector<8x96xf32> to vector<8x64xf32>
    %298 = arith.addf %296, %297 : vector<8x64xf32>
    %cst_65 = arith.constant 5.000000e-01 : f32
    %299 = vector.broadcast %cst_65 : f32 to vector<8x64xf32>
    %300 = arith.mulf %299, %298 : vector<8x64xf32>
    %301 = math.tanh %300 : vector<8x64xf32>
    %cst_66 = arith.constant 5.000000e-01 : f32
    %302 = vector.broadcast %cst_66 : f32 to vector<8x64xf32>
    %303 = arith.mulf %302, %301 : vector<8x64xf32>
    %cst_67 = arith.constant 5.000000e-01 : f32
    %304 = vector.broadcast %cst_67 : f32 to vector<8x64xf32>
    %305 = arith.addf %303, %304 : vector<8x64xf32>
    %306 = vector.extract_strided_slice %305 {offsets = [0, 0], sizes = [8, 32], strides = [1, 1]} : vector<8x64xf32> to vector<8x32xf32>
    %307 = vector.extract_strided_slice %305 {offsets = [0, 32], sizes = [8, 32], strides = [1, 1]} : vector<8x64xf32> to vector<8x32xf32>
    %308 = vector.extract_strided_slice %292 {offsets = [0, 64], sizes = [8, 32], strides = [1, 1]} : vector<8x96xf32> to vector<8x32xf32>
    %309 = vector.extract_strided_slice %295 {offsets = [0, 64], sizes = [8, 32], strides = [1, 1]} : vector<8x96xf32> to vector<8x32xf32>
    %310 = arith.addf %309, %174 : vector<8x32xf32>
    %311 = arith.mulf %306, %310 : vector<8x32xf32>
    %312 = arith.addf %308, %311 : vector<8x32xf32>
    %313 = math.tanh %312 : vector<8x32xf32>
    %314 = arith.subf %291, %313 : vector<8x32xf32>
    %315 = arith.mulf %307, %314 : vector<8x32xf32>
    %316 = arith.addf %313, %315 : vector<8x32xf32>
    %317 = vector.extract_strided_slice %216 {offsets = [0, 0], sizes = [4, 32], strides = [1, 1]} : vector<8x32xf32> to vector<4x32xf32>
    %318 = vector.extract_strided_slice %316 {offsets = [4, 0], sizes = [4, 32], strides = [1, 1]} : vector<8x32xf32> to vector<4x32xf32>
    %319 = tpu.concatenate %317, %318 in 1 : vector<4x32xf32>, vector<4x32xf32> -> vector<4x64xf32>
    %320 = vector.extract_strided_slice %241 {offsets = [0, 0], sizes = [4, 32], strides = [1, 1]} : vector<8x32xf32> to vector<4x32xf32>
    %321 = vector.extract_strided_slice %291 {offsets = [4, 0], sizes = [4, 32], strides = [1, 1]} : vector<8x32xf32> to vector<4x32xf32>
    %322 = tpu.concatenate %320, %321 in 1 : vector<4x32xf32>, vector<4x32xf32> -> vector<4x64xf32>
    %323 = vector.extract_strided_slice %266 {offsets = [0, 0], sizes = [4, 32], strides = [1, 1]} : vector<8x32xf32> to vector<4x32xf32>
    %324 = vector.extract_strided_slice %266 {offsets = [4, 0], sizes = [4, 32], strides = [1, 1]} : vector<8x32xf32> to vector<4x32xf32>
    %325 = tpu.concatenate %323, %324 in 1 : vector<4x32xf32>, vector<4x32xf32> -> vector<4x64xf32>
    %326 = vector.extract_strided_slice %291 {offsets = [0, 0], sizes = [4, 32], strides = [1, 1]} : vector<8x32xf32> to vector<4x32xf32>
    %327 = vector.extract_strided_slice %241 {offsets = [4, 0], sizes = [4, 32], strides = [1, 1]} : vector<8x32xf32> to vector<4x32xf32>
    %328 = tpu.concatenate %326, %327 in 1 : vector<4x32xf32>, vector<4x32xf32> -> vector<4x64xf32>
    %329 = vector.extract_strided_slice %316 {offsets = [0, 0], sizes = [4, 32], strides = [1, 1]} : vector<8x32xf32> to vector<4x32xf32>
    %330 = vector.extract_strided_slice %216 {offsets = [4, 0], sizes = [4, 32], strides = [1, 1]} : vector<8x32xf32> to vector<4x32xf32>
    %331 = tpu.concatenate %329, %330 in 1 : vector<4x32xf32>, vector<4x32xf32> -> vector<4x64xf32>
    %332 = tpu.concatenate %319, %322, %325, %328, %331 in 0 : vector<4x64xf32>, vector<4x64xf32>, vector<4x64xf32>, vector<4x64xf32>, vector<4x64xf32> -> vector<20x64xf32>
    %c0_68 = arith.constant 0 : index
    %c0_69 = arith.constant 0 : index
    %333 = vector.load %arg11[%c0_68, %c0_69] : memref<64x4xf32, #tpu.memory_space<vmem>>, vector<64x4xf32>
    %cst_70 = arith.constant dense<0.000000e+00> : vector<20x4xf32>
    %334 = tpu.matmul %332, %333, %cst_70 {dimension_numbers = #tpu.dot_dimension_numbers<[1], [0], [0], [1], [0, 0, 1, 1], [], []>} : vector<20x64xf32>, vector<64x4xf32>, vector<20x4xf32> -> vector<20x4xf32>
    %c0_71 = arith.constant 0 : index
    %c0_72 = arith.constant 0 : index
    %335 = vector.load %arg12[%c0_71, %c0_72] : memref<1x4xf32, #tpu.memory_space<vmem>>, vector<1x4xf32>
    %336 = vector.broadcast %335 : vector<1x4xf32> to vector<20x4xf32>
    %337 = arith.addf %334, %336 : vector<20x4xf32>
    %cst_73 = arith.constant 0.000000e+00 : f32
    %338 = vector.broadcast %cst_73 : f32 to vector<20x4xf32>
    %339 = arith.maximumf %337, %338 : vector<20x4xf32>
    %c0_74 = arith.constant 0 : index
    %c0_75 = arith.constant 0 : index
    %340 = vector.load %arg14[%c0_74, %c0_75] : memref<20x4xf32, #tpu.memory_space<vmem>>, vector<20x4xf32>
    tpu.vector_store %arg14[%c0_74, %c0_75], %339 {strides = array<i32>} : memref<20x4xf32, #tpu.memory_space<vmem>>, vector<20x4xf32>,
    return
  }
}

</mosaic_0001>

<llo_original>
// kernel: model_forward.1
$region0: #{model_forward.1}
  #allocation0 [shape = 'u32[]', space=smem, size = 0x4, offset = 0x4, fixed_abs, tag = 'smem constant byte address 0x4 - core index']
  #allocation1 [shape = 'u32[144,128]{1,0:T(1,128)}', space=vmem, size = 0x12000, scoped, tag = 'internal scratch']
  %s0 = inlined_call_operand.vmem [shape: f32[20,8], index: 0, kind: input, shape index: {}]
  %s1 = inlined_call_operand.vmem [shape: f32[8,192], index: 1, kind: input, shape index: {}]
  %s2 = inlined_call_operand.hbm [shape: f32[64,96], index: 2, kind: input, shape index: {}]
  %s3 = inlined_call_operand.vmem [shape: f32[1,192], index: 3, kind: input, shape index: {}]
  %s4 = inlined_call_operand.vmem [shape: f32[8,32], index: 4, kind: input, shape index: {}]
  %s5 = inlined_call_operand.hbm [shape: f32[64,64], index: 5, kind: input, shape index: {}]
  %s6 = inlined_call_operand.vmem [shape: f32[1,64], index: 6, kind: input, shape index: {}]
  %s7 = inlined_call_operand.vmem [shape: f32[64,192], index: 7, kind: input, shape index: {}]
  %s8 = inlined_call_operand.hbm [shape: f32[64,96], index: 8, kind: input, shape index: {}]
  %s9 = inlined_call_operand.vmem [shape: f32[1,192], index: 9, kind: input, shape index: {}]
  %s10 = inlined_call_operand.vmem [shape: f32[8,32], index: 10, kind: input, shape index: {}]
  %s11 = inlined_call_operand.vmem [shape: f32[64,4], index: 11, kind: input, shape index: {}]
  %s12 = inlined_call_operand.hbm [shape: f32[1,4], index: 12, kind: input, shape index: {}]
  %s13 = inlined_call_operand.hbm [shape: f32[8,64], index: 13, kind: input, shape index: {}]
  %s14 = inlined_call_operand.vmem [shape: f32[20,4], index: 14, kind: output, shape index: {}]
  %s15 = sld [smem:[#allocation0]]
  $region86: #{model_forward.1} parent=0
    _
  %s17 = ssub.s32 1, %s15
  %s18 = scalar_select 0, %s17, %s15
  $region1: #{model_forward.1} parent=0
    #allocation2 [shape = 'u8[32768]{0}', space=vmem, size = 0x8000, scoped, tag = 'input window, operand 2, single buffered']
    #allocation3 [shape = 's32[1]{0}', space=sflag, size = 0x4, scoped, tag = 'scoped memory for model_forward.1']
    #allocation4 [shape = 'u8[32768]{0}', space=vmem, size = 0x8000, scoped, tag = 'input window, operand 5, single buffered']
    #allocation5 [shape = 's32[1]{0}', space=sflag, size = 0x4, scoped, tag = 'scoped memory for model_forward.1']
    #allocation6 [shape = 'u8[32768]{0}', space=vmem, size = 0x8000, scoped, tag = 'input window, operand 8, single buffered']
    #allocation7 [shape = 'u8[512]{0}', space=vmem, size = 0x400, scoped, tag = 'input window, operand 12, single buffered']
    #allocation8 [shape = 's32[1]{0}', space=sflag, size = 0x4, scoped, tag = 'scoped memory for model_forward.1']
    #allocation9 [shape = 'u8[4096]{0}', space=vmem, size = 0x1000, scoped, tag = 'input window, operand 13, single buffered']
    %19 = vsyncpa [#allocation3], 0
    %20 = vsyncpa [#allocation5], 0
    %21 = vsyncpa [#allocation8], 0
    // Predicated region
    $region2: #{model_forward.1} parent=1 // pred_check
      _
    $region3: #{model_forward.1} parent=1 // pred_check_branch
      %23 = sbr.rel (0) target = $region5
    $region4: #{model_forward.1} parent=1 // pred_region
      _
    $region5: #{model_forward.1} parent=1 // pred_fallthru
      _
    // Predicated region
    $region6: #{model_forward.1} parent=1 // pred_check
      _
    $region7: #{model_forward.1} parent=1 // pred_check_branch
      %25 = sbr.rel (0) target = $region9
    $region8: #{model_forward.1} parent=1 // pred_region
      _
    $region9: #{model_forward.1} parent=1 // pred_fallthru
      _
    // Predicated region
    $region10: #{model_forward.1} parent=1 // pred_check
      _
    $region11: #{model_forward.1} parent=1 // pred_check_branch
      %27 = sbr.rel (0) target = $region13
    $region12: #{model_forward.1} parent=1 // pred_region
      %s29 = ssub.s32 1024, 1024
      %30 = vsyncadd [#allocation3], %s29
      %s31 = sshll.u32 [#allocation2], 4
      %s32 = int_to_ptr.vmem [resolvable:$true] %s31
      %37 = dma.hbm_to_vmem [thread:$0]  %s2, 1024, %s32, [#allocation3], 128, 128, 8
    $region13: #{model_forward.1} parent=1 // pred_fallthru
      _
    // Predicated region
    $region14: #{model_forward.1} parent=1 // pred_check
      _
    $region15: #{model_forward.1} parent=1 // pred_check_branch
      %39 = sbr.rel (0) target = $region17
    $region16: #{model_forward.1} parent=1 // pred_region
      _
    $region17: #{model_forward.1} parent=1 // pred_fallthru
      _
    // Predicated region
    $region18: #{model_forward.1} parent=1 // pred_check
      _
    $region19: #{model_forward.1} parent=1 // pred_check_branch
      %41 = sbr.rel (0) target = $region21
    $region20: #{model_forward.1} parent=1 // pred_region
      _
    $region21: #{model_forward.1} parent=1 // pred_fallthru
      _
    // Predicated region
    $region22: #{model_forward.1} parent=1 // pred_check
      _
    $region23: #{model_forward.1} parent=1 // pred_check_branch
      %43 = sbr.rel (0) target = $region25
    $region24: #{model_forward.1} parent=1 // pred_region
      %s45 = ssub.s32 1024, 1024
      %46 = vsyncadd [#allocation5], %s45
      %s47 = sshll.u32 [#allocation4], 4
      %s48 = int_to_ptr.vmem [resolvable:$true] %s47
      %53 = dma.hbm_to_vmem [thread:$0]  %s5, 1024, %s48, [#allocation5], 128, 128, 8
    $region25: #{model_forward.1} parent=1 // pred_fallthru
      _
    // Predicated region
    $region26: #{model_forward.1} parent=1 // pred_check
      _
    $region27: #{model_forward.1} parent=1 // pred_check_branch
      %55 = sbr.rel (0) target = $region29
    $region28: #{model_forward.1} parent=1 // pred_region
      _
    $region29: #{model_forward.1} parent=1 // pred_fallthru
      _
    // Predicated region
    $region30: #{model_forward.1} parent=1 // pred_check
      _
    $region31: #{model_forward.1} parent=1 // pred_check_branch
      %57 = sbr.rel (0) target = $region33
    $region32: #{model_forward.1} parent=1 // pred_region
      _
    $region33: #{model_forward.1} parent=1 // pred_fallthru
      _
    // Predicated region
    $region34: #{model_forward.1} parent=1 // pred_check
      _
    $region35: #{model_forward.1} parent=1 // pred_check_branch
      %59 = sbr.rel (0) target = $region37
    $region36: #{model_forward.1} parent=1 // pred_region
      %s61 = ssub.s32 1024, 1024
      %62 = vsyncadd [#allocation5], %s61
      %s63 = sshll.u32 [#allocation6], 4
      %s64 = int_to_ptr.vmem [resolvable:$true] %s63
      %69 = dma.hbm_to_vmem [thread:$0]  %s8, 1024, %s64, [#allocation5], 128, 128, 8
    $region37: #{model_forward.1} parent=1 // pred_fallthru
      _
    // Predicated region
    $region38: #{model_forward.1} parent=1 // pred_check
      _
    $region39: #{model_forward.1} parent=1 // pred_check_branch
      %71 = sbr.rel (0) target = $region41
    $region40: #{model_forward.1} parent=1 // pred_region
      _
    $region41: #{model_forward.1} parent=1 // pred_fallthru
      _
    // Predicated region
    $region42: #{model_forward.1} parent=1 // pred_check
      _
    $region43: #{model_forward.1} parent=1 // pred_check_branch
      %73 = sbr.rel (0) target = $region45
    $region44: #{model_forward.1} parent=1 // pred_region
      _
    $region45: #{model_forward.1} parent=1 // pred_fallthru
      _
    // Predicated region
    $region46: #{model_forward.1} parent=1 // pred_check
      _
    $region47: #{model_forward.1} parent=1 // pred_check_branch
      %75 = sbr.rel (0) target = $region49
    $region48: #{model_forward.1} parent=1 // pred_region
      _
    $region49: #{model_forward.1} parent=1 // pred_fallthru
      _
    // Predicated region
    $region50: #{model_forward.1} parent=1 // pred_check
      _
    $region51: #{model_forward.1} parent=1 // pred_check_branch
      %77 = sbr.rel (0) target = $region53
    $region52: #{model_forward.1} parent=1 // pred_region
      %s79 = ssub.s32 16, 16
      %80 = vsyncadd [#allocation8], %s79
      %s82 = sshll.u32 [#allocation7], 4
      %s83 = int_to_ptr.vmem [resolvable:$true] %s82
      %85 = dma.hbm_to_vmem [thread:$0]  %s12, 16, %s83, [#allocation8]
    $region53: #{model_forward.1} parent=1 // pred_fallthru
      _
    // Predicated region
    $region54: #{model_forward.1} parent=1 // pred_check
      _
    $region55: #{model_forward.1} parent=1 // pred_check_branch
      %87 = sbr.rel (0) target = $region57
    $region56: #{model_forward.1} parent=1 // pred_region
      %s89 = ssub.s32 128, 128
      %90 = vsyncadd [#allocation8], %s89
      %s92 = sshll.u32 [#allocation9], 4
      %s93 = int_to_ptr.vmem [resolvable:$true] %s92
      %95 = dma.hbm_to_vmem [thread:$0]  %s13, 128, %s93, [#allocation8]
    $region57: #{model_forward.1} parent=1 // pred_fallthru
      _
    // Predicated region
    $region58: #{model_forward.1} parent=1 // pred_check
      _
    $region59: #{model_forward.1} parent=1 // pred_check_branch
      %97 = sbr.rel (0) target = $region61
    $region60: #{model_forward.1} parent=1 // pred_region
      %98 = dma.done [#allocation3], 1024
    $region61: #{model_forward.1} parent=1 // pred_fallthru
      _
    // Predicated region
    $region62: #{model_forward.1} parent=1 // pred_check
      _
    $region63: #{model_forward.1} parent=1 // pred_check_branch
      %100 = sbr.rel (0) target = $region65
    $region64: #{model_forward.1} parent=1 // pred_region
      %101 = dma.done [#allocation5], 1024
    $region65: #{model_forward.1} parent=1 // pred_fallthru
      _
    // Predicated region
    $region66: #{model_forward.1} parent=1 // pred_check
      _
    $region67: #{model_forward.1} parent=1 // pred_check_branch
      %103 = sbr.rel (0) target = $region69
    $region68: #{model_forward.1} parent=1 // pred_region
      %104 = dma.done [#allocation5], 1024
    $region69: #{model_forward.1} parent=1 // pred_fallthru
      _
    // Predicated region
    $region70: #{model_forward.1} parent=1 // pred_check
      _
    $region71: #{model_forward.1} parent=1 // pred_check_branch
      %106 = sbr.rel (0) target = $region73
    $region72: #{model_forward.1} parent=1 // pred_region
      %107 = dma.done [#allocation8], 16
    $region73: #{model_forward.1} parent=1 // pred_fallthru
      _
    // Predicated region
    $region74: #{model_forward.1} parent=1 // pred_check
      _
    $region75: #{model_forward.1} parent=1 // pred_check_branch
      %109 = sbr.rel (0) target = $region77
    $region76: #{model_forward.1} parent=1 // pred_region
      %110 = dma.done [#allocation8], 128
    $region77: #{model_forward.1} parent=1 // pred_fallthru
      _
    %v111 = vld [vmem:[#allocation9] sm:$0xff]
    %v112 = vld [vmem:[%s0] sm:$0xff]
    %v113 = vld [vmem:[%s0 + $0x8] sm:$0xff]
    %v114 = vld [vmem:[%s0 + $0x10] sm:$0xf]
    %v115 = vld [vmem:[%s1] sm:$0xff]
    %v116 = vld [vmem:[%s1 + $0x8] sm:$0xff]
    %v117 = vld [vmem:[%s3] sm:$0x3]
    %v118 = vld [vmem:[#allocation2] sm:$0xff]
    %v119 = vld [vmem:[#allocation2 + $0x8] sm:$0xff]
    %v120 = vld [vmem:[#allocation2 + $0x10] sm:$0xff]
    %v121 = vld [vmem:[#allocation2 + $0x18] sm:$0xff]
    %v122 = vld [vmem:[#allocation2 + $0x20] sm:$0xff]
    %v123 = vld [vmem:[#allocation2 + $0x28] sm:$0xff]
    %v124 = vld [vmem:[#allocation2 + $0x30] sm:$0xff]
    %v125 = vld [vmem:[#allocation2 + $0x38] sm:$0xff]
    %v126 = vld [vmem:[%s4] sm:$0xff]
    %v128 = vlaneseq
    %v129 = vshrl.u32 %v128, 7
    %v130 = vsub.s32 0, %v129
    %v131 = vrot.slane %v117, %v130
    %v132 = vlaneseq
    %v133 = vshrl.u32 %v132, 7
    %v134 = vsub.s32 1, %v133
    %v135 = vrot.slane %v117, %v134
    %vm138 = vcmask 64512
    %v140 = vsel %vm138, %v112, 0
    %v143 = vsel %vm138, %v113, 0
    %v146 = vsel %vm138, %v114, 0
    %148 = vmatprep.subr.mxu0 %v116
    %149 = vmatpush1.msra.mxu0 %v115
    %150 = vmatprep.subr.mxu0 0.0
    %151 = vmatpush1.msra.mxu0 0.0
    %152 = vmatprep.subr.mxu0 0.0
    %153 = vmatpush1.msra.mxu0 0.0
    %154 = vmatprep.subr.mxu0 0.0
    %155 = vmatpush1.msra.mxu0 0.0
    %156 = vmatprep.subr.mxu0 0.0
    %157 = vmatpush1.msra.mxu0 0.0
    %158 = vmatprep.subr.mxu0 0.0
    %159 = vmatpush1.msra.mxu0 0.0
    %160 = vmatprep.subr.mxu0 0.0
    %161 = vmatpush1.msra.mxu0 0.0
    %162 = vmatprep.subr.mxu0 0.0
    %163 = vmatpush1.msra.mxu0 0.0
    %164 = vmatprep.subr.mxu0 0.0
    %165 = vmatpush1.msra.mxu0 0.0
    %166 = vmatprep.subr.mxu0 0.0
    %167 = vmatpush1.msra.mxu0 0.0
    %168 = vmatprep.subr.mxu0 0.0
    %169 = vmatpush1.msra.mxu0 0.0
    %170 = vmatprep.subr.mxu0 0.0
    %171 = vmatpush1.msra.mxu0 0.0
    %172 = vmatprep.subr.mxu0 0.0
    %173 = vmatpush1.msra.mxu0 0.0
    %174 = vmatprep.subr.mxu0 0.0
    %175 = vmatpush1.msra.mxu0 0.0
    %176 = vmatprep.subr.mxu0 0.0
    %177 = vmatpush1.msra.mxu0 0.0
    %178 = vmatprep.subr.mxu0 0.0
    %179 = vmatpush1.msra.mxu0 0.0
    %180 = vmatprep.subr.mxu0 0.0
    %181 = vmatpush1.msra.mxu0 0.0
    %182 = vmatprep.subr.mxu0 0.0
    %183 = vmatpush1.msra.mxu0 0.0
    %184 = vmatprep.subr.mxu0 0.0
    %185 = vmatpush1.msra.mxu0 0.0
    %186 = vmatprep.subr.mxu0 0.0
    %187 = vmatpush1.msra.mxu0 0.0
    %188 = vmatprep.subr.mxu0 0.0
    %189 = vmatpush1.msra.mxu0 0.0
    %190 = vmatprep.subr.mxu0 0.0
    %191 = vmatpush1.msra.mxu0 0.0
    %192 = vmatprep.subr.mxu0 0.0
    %193 = vmatpush1.msra.mxu0 0.0
    %194 = vmatprep.subr.mxu0 0.0
    %195 = vmatpush1.msra.mxu0 0.0
    %196 = vmatprep.subr.mxu0 0.0
    %197 = vmatpush1.msra.mxu0 0.0
    %198 = vmatprep.subr.mxu0 0.0
    %199 = vmatpush1.msra.mxu0 0.0
    %200 = vmatprep.subr.mxu0 0.0
    %201 = vmatpush1.msra.mxu0 0.0
    %202 = vmatprep.subr.mxu0 0.0
    %203 = vmatpush1.msra.mxu0 0.0
    %204 = vmatprep.subr.mxu0 0.0
    %205 = vmatpush1.msra.mxu0 0.0
    %206 = vmatprep.subr.mxu0 0.0
    %207 = vmatpush1.msra.mxu0 0.0
    %208 = vmatprep.subr.mxu0 0.0
    %209 = vmatpush1.msra.mxu0 0.0
    %210 = vmatprep.subr.mxu0 0.0
    %211 = vmatpush1.msra.mxu0 0.0
    %212 = vmatprep.mubr.f32.mxu0 0.0
    %213 = vmatmul.mubr.f32.gmra.mrb[0].mxu0 %v140
    %v214 = vpop.f32.mrb[0].mxu0
    %v215 = vadd.f32 %v131, %v214
    %v216 = vpop.f32.mrb[0].mxu0
    %v217 = vadd.f32 %v135, %v216
    %218 = vmatprep.mubr.f32.mxu0 0.0
    %219 = vmatmul.mubr.f32.gmra.mrb[0].mxu0 %v143
    %v220 = vpop.f32.mrb[0].mxu0
    %v221 = vadd.f32 %v131, %v220
    %v222 = vpop.f32.mrb[0].mxu0
    %v223 = vadd.f32 %v135, %v222
    %224 = vmatprep.mubr.f32.mxu0 0.0
    %225 = vmatmul.mubr.f32.gmra.mrb[0].mxu0 %v146
    %v226 = vpop.f32.mrb[0].mxu0
    %v227 = vadd.f32 %v131, %v226
    %v228 = vpop.f32.mrb[0].mxu0
    %v229 = vadd.f32 %v135, %v228
    %230 = vdwg.mxu0
    %v233 = vrot.slane %v227, 4
    %v234 = vrot.slane %v229, 4
    %235 = vrot.lane.b32.xlu0 %v233, 32
    %v236 = vpop.permute.xlu0 %235
    %237 = vrot.lane.b32.xlu0 %v234, 32
    %v238 = vpop.permute.xlu0 %237
    %vm239 = vcmask 261120
    %v240 = vsel %vm239, %v236, %v238
    %v243 = vrot.slane %v215, 4
    %247 = vrot.lane.b32.xlu0 %v221, 32
    %v248 = vpop.permute.xlu0 %247
    %249 = vrot.lane.b32.xlu0 %v223, 32
    %v250 = vpop.permute.xlu0 %249
    %v251 = vsel %vm239, %v248, %v250
    %v253 = vrot.slane %v221, 4
    %v254 = vrot.slane %v223, 4
    %255 = vrot.lane.b32.xlu0 %v253, 32
    %v256 = vpop.permute.xlu0 %255
    %257 = vrot.lane.b32.xlu0 %v254, 32
    %v258 = vpop.permute.xlu0 %257
    %v259 = vsel %vm239, %v256, %v258
    %263 = vrot.lane.b32.xlu0 %v215, 32
    %v264 = vpop.permute.xlu0 %263
    %265 = vrot.lane.b32.xlu0 %v217, 32
    %v266 = vpop.permute.xlu0 %265
    %v267 = vsel %vm239, %v264, %v266
    %v269 = vrot.slane %v217, 4
    %270 = vrot.lane.b32.xlu0 %v243, 32
    %v271 = vpop.permute.xlu0 %270
    %272 = vrot.lane.b32.xlu0 %v269, 32
    %v273 = vpop.permute.xlu0 %272
    %v274 = vsel %vm239, %v271, %v273
    %vm276 = vcmask 1043456
    %v277 = vsel %vm276, %v215, %v240
    %v278 = vsel %vm276, %v243, %v251
    %v279 = vsel %vm276, %v221, %v259
    %v280 = vsel %vm276, %v253, %v267
    %v281 = vsel %vm276, %v227, %v274
    %v282 = vmul.f32 %v111, 0.0
    %vm283 = vcmask 523264
    %v285 = vsel %vm283, %v282, 0
    %287 = vmatprep.subr.mxu0 0.0
    %288 = vmatpush1.msra.mxu0 %v118
    %289 = vmatprep.subr.mxu0 0.0
    %290 = vmatpush1.msra.mxu0 %v119
    %291 = vmatprep.subr.mxu0 0.0
    %292 = vmatpush1.msra.mxu0 %v120
    %293 = vmatprep.subr.mxu0 0.0
    %294 = vmatpush1.msra.mxu0 %v121
    %295 = vmatprep.subr.mxu0 0.0
    %296 = vmatpush1.msra.mxu0 %v122
    %297 = vmatprep.subr.mxu0 0.0
    %298 = vmatpush1.msra.mxu0 %v123
    %299 = vmatprep.subr.mxu0 0.0
    %300 = vmatpush1.msra.mxu0 %v124
    %301 = vmatprep.subr.mxu0 0.0
    %302 = vmatpush1.msra.mxu0 %v125
    %303 = vmatprep.subr.mxu0 0.0
    %304 = vmatpush1.msra.mxu0 0.0
    %305 = vmatprep.subr.mxu0 0.0
    %306 = vmatpush1.msra.mxu0 0.0
    %307 = vmatprep.subr.mxu0 0.0
    %308 = vmatpush1.msra.mxu0 0.0
    %309 = vmatprep.subr.mxu0 0.0
    %310 = vmatpush1.msra.mxu0 0.0
    %311 = vmatprep.subr.mxu0 0.0
    %312 = vmatpush1.msra.mxu0 0.0
    %313 = vmatprep.subr.mxu0 0.0
    %314 = vmatpush1.msra.mxu0 0.0
    %315 = vmatprep.subr.mxu0 0.0
    %316 = vmatpush1.msra.mxu0 0.0
    %317 = vmatprep.subr.mxu0 0.0
    %318 = vmatpush1.msra.mxu0 0.0
    %319 = vmatprep.subr.mxu0 0.0
    %320 = vmatpush1.msra.mxu0 0.0
    %321 = vmatprep.subr.mxu0 0.0
    %322 = vmatpush1.msra.mxu0 0.0
    %323 = vmatprep.subr.mxu0 0.0
    %324 = vmatpush1.msra.mxu0 0.0
    %325 = vmatprep.subr.mxu0 0.0
    %326 = vmatpush1.msra.mxu0 0.0
    %327 = vmatprep.subr.mxu0 0.0
    %328 = vmatpush1.msra.mxu0 0.0
    %329 = vmatprep.subr.mxu0 0.0
    %330 = vmatpush1.msra.mxu0 0.0
    %331 = vmatprep.subr.mxu0 0.0
    %332 = vmatpush1.msra.mxu0 0.0
    %333 = vmatprep.subr.mxu0 0.0
    %334 = vmatpush1.msra.mxu0 0.0
    %335 = vmatprep.subr.mxu0 0.0
    %336 = vmatpush1.msra.mxu0 0.0
    %337 = vmatprep.subr.mxu0 0.0
    %338 = vmatpush1.msra.mxu0 0.0
    %339 = vmatprep.subr.mxu0 0.0
    %340 = vmatpush1.msra.mxu0 0.0
    %341 = vmatprep.subr.mxu0 0.0
    %342 = vmatpush1.msra.mxu0 0.0
    %343 = vmatprep.subr.mxu0 0.0
    %344 = vmatpush1.msra.mxu0 0.0
    %345 = vmatprep.subr.mxu0 0.0
    %346 = vmatpush1.msra.mxu0 0.0
    %347 = vmatprep.subr.mxu0 0.0
    %348 = vmatpush1.msra.mxu0 0.0
    %349 = vmatprep.subr.mxu0 0.0
    %350 = vmatpush1.msra.mxu0 0.0
    %351 = vmatprep.mubr.f32.mxu0 0.0
    %352 = vmatmul.mubr.f32.gmra.mrb[0].mxu0 %v285
    %v353 = vpop.f32.mrb[0].mxu0
    %v354 = vadd.f32 0.0, %v353
    %v355 = vpop.f32.mrb[0].mxu0
    %356 = vdwg.mxu0
    %v357 = vadd.f32 %v277, %v354
    %v358 = vmul.f32 %v357, 0.5
    %v359 = vtanh.pop %v358
    %v360 = vmul.f32 %v359, 0.5
    %v361 = vadd.f32 %v360, 0.5
    %363 = vrot.lane.b32.xlu0 %v126, 64
    %v364 = vpop.permute.xlu0 %363
    %v366 = vadd.f32 %v354, %v364
    %368 = vrot.lane.b32.xlu0 %v366, 64
    %v369 = vpop.permute.xlu0 %368
    %v371 = vmul.f32 %v361, %v369
    %373 = vrot.lane.b32.xlu0 %v371, 64
    %v374 = vpop.permute.xlu0 %373
    %v376 = vadd.f32 %v277, %v374
    %v377 = vtanh.pop %v376
    %v378 = vsub.f32 0.0, %v377
    %380 = vrot.lane.b32.xlu0 %v378, 96
    %v381 = vpop.permute.xlu0 %380
    %v383 = vmul.f32 %v361, %v381
    %385 = vrot.lane.b32.xlu0 %v383, 32
    %v386 = vpop.permute.xlu0 %385
    %v388 = vadd.f32 %v377, %v386
    %390 = vrot.lane.b32.xlu0 %v388, 64
    %v391 = vpop.permute.xlu0 %390
    %393 = vrot.lane.b32.xlu0 %v388, 96
    %v394 = vpop.permute.xlu0 %393
    %v396 = vsel %vm239, %v391, %v394
    %v397 = vmul.f32 %v396, %v111
    %v399 = vsel %vm283, %v397, 0
    %401 = vmatprep.subr.mxu0 0.0
    %402 = vmatpush1.msra.mxu0 %v118
    %403 = vmatprep.subr.mxu0 0.0
    %404 = vmatpush1.msra.mxu0 %v119
    %405 = vmatprep.subr.mxu0 0.0
    %406 = vmatpush1.msra.mxu0 %v120
    %407 = vmatprep.subr.mxu0 0.0
    %408 = vmatpush1.msra.mxu0 %v121
    %409 = vmatprep.subr.mxu0 0.0
    %410 = vmatpush1.msra.mxu0 %v122
    %411 = vmatprep.subr.mxu0 0.0
    %412 = vmatpush1.msra.mxu0 %v123
    %413 = vmatprep.subr.mxu0 0.0
    %414 = vmatpush1.msra.mxu0 %v124
    %415 = vmatprep.subr.mxu0 0.0
    %416 = vmatpush1.msra.mxu0 %v125
    %417 = vmatprep.subr.mxu0 0.0
    %418 = vmatpush1.msra.mxu0 0.0
    %419 = vmatprep.subr.mxu0 0.0
    %420 = vmatpush1.msra.mxu0 0.0
    %421 = vmatprep.subr.mxu0 0.0
    %422 = vmatpush1.msra.mxu0 0.0
    %423 = vmatprep.subr.mxu0 0.0
    %424 = vmatpush1.msra.mxu0 0.0
    %425 = vmatprep.subr.mxu0 0.0
    %426 = vmatpush1.msra.mxu0 0.0
    %427 = vmatprep.subr.mxu0 0.0
    %428 = vmatpush1.msra.mxu0 0.0
    %429 = vmatprep.subr.mxu0 0.0
    %430 = vmatpush1.msra.mxu0 0.0
    %431 = vmatprep.subr.mxu0 0.0
    %432 = vmatpush1.msra.mxu0 0.0
    %433 = vmatprep.subr.mxu0 0.0
    %434 = vmatpush1.msra.mxu0 0.0
    %435 = vmatprep.subr.mxu0 0.0
    %436 = vmatpush1.msra.mxu0 0.0
    %437 = vmatprep.subr.mxu0 0.0
    %438 = vmatpush1.msra.mxu0 0.0
    %439 = vmatprep.subr.mxu0 0.0
    %440 = vmatpush1.msra.mxu0 0.0
    %441 = vmatprep.subr.mxu0 0.0
    %442 = vmatpush1.msra.mxu0 0.0
    %443 = vmatprep.subr.mxu0 0.0
    %444 = vmatpush1.msra.mxu0 0.0
    %445 = vmatprep.subr.mxu0 0.0
    %446 = vmatpush1.msra.mxu0 0.0
    %447 = vmatprep.subr.mxu0 0.0
    %448 = vmatpush1.msra.mxu0 0.0
    %449 = vmatprep.subr.mxu0 0.0
    %450 = vmatpush1.msra.mxu0 0.0
    %451 = vmatprep.subr.mxu0 0.0
    %452 = vmatpush1.msra.mxu0 0.0
    %453 = vmatprep.subr.mxu0 0.0
    %454 = vmatpush1.msra.mxu0 0.0
    %455 = vmatprep.subr.mxu0 0.0
    %456 = vmatpush1.msra.mxu0 0.0
    %457 = vmatprep.subr.mxu0 0.0
    %458 = vmatpush1.msra.mxu0 0.0
    %459 = vmatprep.subr.mxu0 0.0
    %460 = vmatpush1.msra.mxu0 0.0
    %461 = vmatprep.subr.mxu0 0.0
    %462 = vmatpush1.msra.mxu0 0.0
    %463 = vmatprep.subr.mxu0 0.0
    %464 = vmatpush1.msra.mxu0 0.0
    %465 = vmatprep.mubr.f32.mxu0 0.0
    %466 = vmatmul.mubr.f32.gmra.mrb[0].mxu0 %v399
    %v467 = vpop.f32.mrb[0].mxu0
    %v468 = vadd.f32 0.0, %v467
    %v469 = vpop.f32.mrb[0].mxu0
    %470 = vdwg.mxu0
    %v471 = vadd.f32 %v278, %v468
    %v472 = vmul.f32 %v471, 0.5
    %v473 = vtanh.pop %v472
    %v474 = vmul.f32 %v473, 0.5
    %v475 = vadd.f32 %v474, 0.5
    %v476 = vadd.f32 %v468, %v364
    %478 = vrot.lane.b32.xlu0 %v476, 64
    %v479 = vpop.permute.xlu0 %478
    %v481 = vmul.f32 %v475, %v479
    %483 = vrot.lane.b32.xlu0 %v481, 64
    %v484 = vpop.permute.xlu0 %483
    %v486 = vadd.f32 %v278, %v484
    %v487 = vtanh.pop %v486
    %v488 = vsub.f32 %v388, %v487
    %490 = vrot.lane.b32.xlu0 %v488, 96
    %v491 = vpop.permute.xlu0 %490
    %v493 = vmul.f32 %v475, %v491
    %495 = vrot.lane.b32.xlu0 %v493, 32
    %v496 = vpop.permute.xlu0 %495
    %v498 = vadd.f32 %v487, %v496
    %500 = vrot.lane.b32.xlu0 %v498, 64
    %v501 = vpop.permute.xlu0 %500
    %503 = vrot.lane.b32.xlu0 %v498, 96
    %v504 = vpop.permute.xlu0 %503
    %v506 = vsel %vm239, %v501, %v504
    %v507 = vmul.f32 %v506, %v111
    %v509 = vsel %vm283, %v507, 0
    %511 = vmatprep.subr.mxu0 0.0
    %512 = vmatpush1.msra.mxu0 %v118
    %513 = vmatprep.subr.mxu0 0.0
    %514 = vmatpush1.msra.mxu0 %v119
    %515 = vmatprep.subr.mxu0 0.0
    %516 = vmatpush1.msra.mxu0 %v120
    %517 = vmatprep.subr.mxu0 0.0
    %518 = vmatpush1.msra.mxu0 %v121
    %519 = vmatprep.subr.mxu0 0.0
    %520 = vmatpush1.msra.mxu0 %v122
    %521 = vmatprep.subr.mxu0 0.0
    %522 = vmatpush1.msra.mxu0 %v123
    %523 = vmatprep.subr.mxu0 0.0
    %524 = vmatpush1.msra.mxu0 %v124
    %525 = vmatprep.subr.mxu0 0.0
    %526 = vmatpush1.msra.mxu0 %v125
    %527 = vmatprep.subr.mxu0 0.0
    %528 = vmatpush1.msra.mxu0 0.0
    %529 = vmatprep.subr.mxu0 0.0
    %530 = vmatpush1.msra.mxu0 0.0
    %531 = vmatprep.subr.mxu0 0.0
    %532 = vmatpush1.msra.mxu0 0.0
    %533 = vmatprep.subr.mxu0 0.0
    %534 = vmatpush1.msra.mxu0 0.0
    %535 = vmatprep.subr.mxu0 0.0
    %536 = vmatpush1.msra.mxu0 0.0
    %537 = vmatprep.subr.mxu0 0.0
    %538 = vmatpush1.msra.mxu0 0.0
    %539 = vmatprep.subr.mxu0 0.0
    %540 = vmatpush1.msra.mxu0 0.0
    %541 = vmatprep.subr.mxu0 0.0
    %542 = vmatpush1.msra.mxu0 0.0
    %543 = vmatprep.subr.mxu0 0.0
    %544 = vmatpush1.msra.mxu0 0.0
    %545 = vmatprep.subr.mxu0 0.0
    %546 = vmatpush1.msra.mxu0 0.0
    %547 = vmatprep.subr.mxu0 0.0
    %548 = vmatpush1.msra.mxu0 0.0
    %549 = vmatprep.subr.mxu0 0.0
    %550 = vmatpush1.msra.mxu0 0.0
    %551 = vmatprep.subr.mxu0 0.0
    %552 = vmatpush1.msra.mxu0 0.0
    %553 = vmatprep.subr.mxu0 0.0
    %554 = vmatpush1.msra.mxu0 0.0
    %555 = vmatprep.subr.mxu0 0.0
    %556 = vmatpush1.msra.mxu0 0.0
    %557 = vmatprep.subr.mxu0 0.0
    %558 = vmatpush1.msra.mxu0 0.0
    %559 = vmatprep.subr.mxu0 0.0
    %560 = vmatpush1.msra.mxu0 0.0
    %561 = vmatprep.subr.mxu0 0.0
    %562 = vmatpush1.msra.mxu0 0.0
    %563 = vmatprep.subr.mxu0 0.0
    %564 = vmatpush1.msra.mxu0 0.0
    %565 = vmatprep.subr.mxu0 0.0
    %566 = vmatpush1.msra.mxu0 0.0
    %567 = vmatprep.subr.mxu0 0.0
    %568 = vmatpush1.msra.mxu0 0.0
    %569 = vmatprep.subr.mxu0 0.0
    %570 = vmatpush1.msra.mxu0 0.0
    %571 = vmatprep.subr.mxu0 0.0
    %572 = vmatpush1.msra.mxu0 0.0
    %573 = vmatprep.subr.mxu0 0.0
    %574 = vmatpush1.msra.mxu0 0.0
    %575 = vmatprep.mubr.f32.mxu0 0.0
    %576 = vmatmul.mubr.f32.gmra.mrb[0].mxu0 %v509
    %v577 = vpop.f32.mrb[0].mxu0
    %v578 = vadd.f32 0.0, %v577
    %v579 = vpop.f32.mrb[0].mxu0
    %580 = vdwg.mxu0
    %v581 = vadd.f32 %v279, %v578
    %v582 = vmul.f32 %v581, 0.5
    %v583 = vtanh.pop %v582
    %v584 = vmul.f32 %v583, 0.5
    %v585 = vadd.f32 %v584, 0.5
    %v586 = vadd.f32 %v578, %v364
    %588 = vrot.lane.b32.xlu0 %v586, 64
    %v589 = vpop.permute.xlu0 %588
    %v591 = vmul.f32 %v585, %v589
    %593 = vrot.lane.b32.xlu0 %v591, 64
    %v594 = vpop.permute.xlu0 %593
    %v596 = vadd.f32 %v279, %v594
    %v597 = vtanh.pop %v596
    %v598 = vsub.f32 %v498, %v597
    %600 = vrot.lane.b32.xlu0 %v598, 96
    %v601 = vpop.permute.xlu0 %600
    %v603 = vmul.f32 %v585, %v601
    %605 = vrot.lane.b32.xlu0 %v603, 32
    %v606 = vpop.permute.xlu0 %605
    %v608 = vadd.f32 %v597, %v606
    %610 = vrot.lane.b32.xlu0 %v608, 64
    %v611 = vpop.permute.xlu0 %610
    %613 = vrot.lane.b32.xlu0 %v608, 96
    %v614 = vpop.permute.xlu0 %613
    %v616 = vsel %vm239, %v611, %v614
    %v617 = vmul.f32 %v616, %v111
    %v619 = vsel %vm283, %v617, 0
    %621 = vmatprep.subr.mxu0 0.0
    %622 = vmatpush1.msra.mxu0 %v118
    %623 = vmatprep.subr.mxu0 0.0
    %624 = vmatpush1.msra.mxu0 %v119
    %625 = vmatprep.subr.mxu0 0.0
    %626 = vmatpush1.msra.mxu0 %v120
    %627 = vmatprep.subr.mxu0 0.0
    %628 = vmatpush1.msra.mxu0 %v121
    %629 = vmatprep.subr.mxu0 0.0
    %630 = vmatpush1.msra.mxu0 %v122
    %631 = vmatprep.subr.mxu0 0.0
    %632 = vmatpush1.msra.mxu0 %v123
    %633 = vmatprep.subr.mxu0 0.0
    %634 = vmatpush1.msra.mxu0 %v124
    %635 = vmatprep.subr.mxu0 0.0
    %636 = vmatpush1.msra.mxu0 %v125
    %637 = vmatprep.subr.mxu0 0.0
    %638 = vmatpush1.msra.mxu0 0.0
    %639 = vmatprep.subr.mxu0 0.0
    %640 = vmatpush1.msra.mxu0 0.0
    %641 = vmatprep.subr.mxu0 0.0
    %642 = vmatpush1.msra.mxu0 0.0
    %643 = vmatprep.subr.mxu0 0.0
    %644 = vmatpush1.msra.mxu0 0.0
    %645 = vmatprep.subr.mxu0 0.0
    %646 = vmatpush1.msra.mxu0 0.0
    %647 = vmatprep.subr.mxu0 0.0
    %648 = vmatpush1.msra.mxu0 0.0
    %649 = vmatprep.subr.mxu0 0.0
    %650 = vmatpush1.msra.mxu0 0.0
    %651 = vmatprep.subr.mxu0 0.0
    %652 = vmatpush1.msra.mxu0 0.0
    %653 = vmatprep.subr.mxu0 0.0
    %654 = vmatpush1.msra.mxu0 0.0
    %655 = vmatprep.subr.mxu0 0.0
    %656 = vmatpush1.msra.mxu0 0.0
    %657 = vmatprep.subr.mxu0 0.0
    %658 = vmatpush1.msra.mxu0 0.0
    %659 = vmatprep.subr.mxu0 0.0
    %660 = vmatpush1.msra.mxu0 0.0
    %661 = vmatprep.subr.mxu0 0.0
    %662 = vmatpush1.msra.mxu0 0.0
    %663 = vmatprep.subr.mxu0 0.0
    %664 = vmatpush1.msra.mxu0 0.0
    %665 = vmatprep.subr.mxu0 0.0
    %666 = vmatpush1.msra.mxu0 0.0
    %667 = vmatprep.subr.mxu0 0.0
    %668 = vmatpush1.msra.mxu0 0.0
    %669 = vmatprep.subr.mxu0 0.0
    %670 = vmatpush1.msra.mxu0 0.0
    %671 = vmatprep.subr.mxu0 0.0
    %672 = vmatpush1.msra.mxu0 0.0
    %673 = vmatprep.subr.mxu0 0.0
    %674 = vmatpush1.msra.mxu0 0.0
    %675 = vmatprep.subr.mxu0 0.0
    %676 = vmatpush1.msra.mxu0 0.0
    %677 = vmatprep.subr.mxu0 0.0
    %678 = vmatpush1.msra.mxu0 0.0
    %679 = vmatprep.subr.mxu0 0.0
    %680 = vmatpush1.msra.mxu0 0.0
    %681 = vmatprep.subr.mxu0 0.0
    %682 = vmatpush1.msra.mxu0 0.0
    %683 = vmatprep.subr.mxu0 0.0
    %684 = vmatpush1.msra.mxu0 0.0
    %685 = vmatprep.mubr.f32.mxu0 0.0
    %686 = vmatmul.mubr.f32.gmra.mrb[0].mxu0 %v619
    %v687 = vpop.f32.mrb[0].mxu0
    %v688 = vadd.f32 0.0, %v687
    %v689 = vpop.f32.mrb[0].mxu0
    %690 = vdwg.mxu0
    %v691 = vadd.f32 %v280, %v688
    %v692 = vmul.f32 %v691, 0.5
    %v693 = vtanh.pop %v692
    %v694 = vmul.f32 %v693, 0.5
    %v695 = vadd.f32 %v694, 0.5
    %v696 = vadd.f32 %v688, %v364
    %698 = vrot.lane.b32.xlu0 %v696, 64
    %v699 = vpop.permute.xlu0 %698
    %v701 = vmul.f32 %v695, %v699
    %703 = vrot.lane.b32.xlu0 %v701, 64
    %v704 = vpop.permute.xlu0 %703
    %v706 = vadd.f32 %v280, %v704
    %v707 = vtanh.pop %v706
    %v708 = vsub.f32 %v608, %v707
    %710 = vrot.lane.b32.xlu0 %v708, 96
    %v711 = vpop.permute.xlu0 %710
    %v713 = vmul.f32 %v695, %v711
    %715 = vrot.lane.b32.xlu0 %v713, 32
    %v716 = vpop.permute.xlu0 %715
    %v718 = vadd.f32 %v707, %v716
    %720 = vrot.lane.b32.xlu0 %v718, 64
    %v721 = vpop.permute.xlu0 %720
    %723 = vrot.lane.b32.xlu0 %v718, 96
    %v724 = vpop.permute.xlu0 %723
    %v726 = vsel %vm239, %v721, %v724
    %v727 = vmul.f32 %v726, %v111
    %v729 = vsel %vm283, %v727, 0
    %731 = vmatprep.subr.mxu0 0.0
    %732 = vmatpush1.msra.mxu0 %v118
    %733 = vmatprep.subr.mxu0 0.0
    %734 = vmatpush1.msra.mxu0 %v119
    %735 = vmatprep.subr.mxu0 0.0
    %736 = vmatpush1.msra.mxu0 %v120
    %737 = vmatprep.subr.mxu0 0.0
    %738 = vmatpush1.msra.mxu0 %v121
    %739 = vmatprep.subr.mxu0 0.0
    %740 = vmatpush1.msra.mxu0 %v122
    %741 = vmatprep.subr.mxu0 0.0
    %742 = vmatpush1.msra.mxu0 %v123
    %743 = vmatprep.subr.mxu0 0.0
    %744 = vmatpush1.msra.mxu0 %v124
    %745 = vmatprep.subr.mxu0 0.0
    %746 = vmatpush1.msra.mxu0 %v125
    %747 = vmatprep.subr.mxu0 0.0
    %748 = vmatpush1.msra.mxu0 0.0
    %749 = vmatprep.subr.mxu0 0.0
    %750 = vmatpush1.msra.mxu0 0.0
    %751 = vmatprep.subr.mxu0 0.0
    %752 = vmatpush1.msra.mxu0 0.0
    %753 = vmatprep.subr.mxu0 0.0
    %754 = vmatpush1.msra.mxu0 0.0
    %755 = vmatprep.subr.mxu0 0.0
    %756 = vmatpush1.msra.mxu0 0.0
    %757 = vmatprep.subr.mxu0 0.0
    %758 = vmatpush1.msra.mxu0 0.0
    %759 = vmatprep.subr.mxu0 0.0
    %760 = vmatpush1.msra.mxu0 0.0
    %761 = vmatprep.subr.mxu0 0.0
    %762 = vmatpush1.msra.mxu0 0.0
    %763 = vmatprep.subr.mxu0 0.0
    %764 = vmatpush1.msra.mxu0 0.0
    %765 = vmatprep.subr.mxu0 0.0
    %766 = vmatpush1.msra.mxu0 0.0
    %767 = vmatprep.subr.mxu0 0.0
    %768 = vmatpush1.msra.mxu0 0.0
    %769 = vmatprep.subr.mxu0 0.0
    %770 = vmatpush1.msra.mxu0 0.0
    %771 = vmatprep.subr.mxu0 0.0
    %772 = vmatpush1.msra.mxu0 0.0
    %773 = vmatprep.subr.mxu0 0.0
    %774 = vmatpush1.msra.mxu0 0.0
    %775 = vmatprep.subr.mxu0 0.0
    %776 = vmatpush1.msra.mxu0 0.0
    %777 = vmatprep.subr.mxu0 0.0
    %778 = vmatpush1.msra.mxu0 0.0
    %779 = vmatprep.subr.mxu0 0.0
    %780 = vmatpush1.msra.mxu0 0.0
    %781 = vmatprep.subr.mxu0 0.0
    %782 = vmatpush1.msra.mxu0 0.0
    %783 = vmatprep.subr.mxu0 0.0
    %784 = vmatpush1.msra.mxu0 0.0
    %785 = vmatprep.subr.mxu0 0.0
    %786 = vmatpush1.msra.mxu0 0.0
    %787 = vmatprep.subr.mxu0 0.0
    %788 = vmatpush1.msra.mxu0 0.0
    %789 = vmatprep.subr.mxu0 0.0
    %790 = vmatpush1.msra.mxu0 0.0
    %791 = vmatprep.subr.mxu0 0.0
    %792 = vmatpush1.msra.mxu0 0.0
    %793 = vmatprep.subr.mxu0 0.0
    %794 = vmatpush1.msra.mxu0 0.0
    %795 = vmatprep.mubr.f32.mxu0 0.0
    %796 = vmatmul.mubr.f32.gmra.mrb[0].mxu0 %v729
    %v797 = vpop.f32.mrb[0].mxu0
    %v798 = vadd.f32 0.0, %v797
    %v799 = vpop.f32.mrb[0].mxu0
    %800 = vdwg.mxu0
    %v801 = vadd.f32 %v281, %v798
    %v802 = vmul.f32 %v801, 0.5
    %v803 = vtanh.pop %v802
    %v804 = vmul.f32 %v803, 0.5
    %v805 = vadd.f32 %v804, 0.5
    %v806 = vadd.f32 %v798, %v364
    %808 = vrot.lane.b32.xlu0 %v806, 64
    %v809 = vpop.permute.xlu0 %808
    %v811 = vmul.f32 %v805, %v809
    %813 = vrot.lane.b32.xlu0 %v811, 64
    %v814 = vpop.permute.xlu0 %813
    %v816 = vadd.f32 %v281, %v814
    %v817 = vtanh.pop %v816
    %v818 = vsub.f32 %v718, %v817
    %820 = vrot.lane.b32.xlu0 %v818, 96
    %v821 = vpop.permute.xlu0 %820
    %v823 = vmul.f32 %v805, %v821
    %825 = vrot.lane.b32.xlu0 %v823, 32
    %v826 = vpop.permute.xlu0 %825
    %v828 = vadd.f32 %v817, %v826
    %v830 = vrot.slane %v828, 4
    %831 = vrot.lane.b32.xlu0 %v830, 96
    %v832 = vpop.permute.xlu0 %831
    %v834 = vsel %vm239, %v391, %v832
    %v835 = vrot.slane %v718, 4
    %836 = vrot.lane.b32.xlu0 %v835, 96
    %v837 = vpop.permute.xlu0 %836
    %v839 = vsel %vm239, %v501, %v837
    %v840 = vrot.slane %v608, 4
    %841 = vrot.lane.b32.xlu0 %v840, 96
    %v842 = vpop.permute.xlu0 %841
    %v844 = vsel %vm239, %v611, %v842
    %v845 = vrot.slane %v498, 4
    %846 = vrot.lane.b32.xlu0 %v845, 96
    %v847 = vpop.permute.xlu0 %846
    %v849 = vsel %vm239, %v721, %v847
    %850 = vrot.lane.b32.xlu0 %v828, 64
    %v851 = vpop.permute.xlu0 %850
    %v853 = vrot.slane %v388, 4
    %854 = vrot.lane.b32.xlu0 %v853, 96
    %v855 = vpop.permute.xlu0 %854
    %v857 = vsel %vm239, %v851, %v855
    %v859 = vrot.slane %v839, 4
    %v862 = vrot.slane %v849, 4
    %v864 = vsel %vm276, %v834, %v859
    %v865 = vsel %vm276, %v844, %v862
    %v866 = vld [vmem:[#allocation4] sm:$0xff]
    %v867 = vld [vmem:[#allocation4 + $0x8] sm:$0xff]
    %v868 = vld [vmem:[#allocation4 + $0x10] sm:$0xff]
    %v869 = vld [vmem:[#allocation4 + $0x18] sm:$0xff]
    %v870 = vld [vmem:[#allocation4 + $0x20] sm:$0xff]
    %v871 = vld [vmem:[#allocation4 + $0x28] sm:$0xff]
    %v872 = vld [vmem:[#allocation4 + $0x30] sm:$0xff]
    %v873 = vld [vmem:[#allocation4 + $0x38] sm:$0xff]
    %v874 = vld [vmem:[%s6] sm:$0x1]
    %v876 = vlaneseq
    %v877 = vshrl.u32 %v876, 7
    %v878 = vsub.s32 0, %v877
    %v879 = vrot.slane %v874, %v878
    %v882 = vsel %vm283, %v864, 0
    %v885 = vsel %vm283, %v865, 0
    %v888 = vsel %vm283, %v857, 0
    %890 = vmatprep.subr.mxu0 0.0
    %891 = vmatpush1.msra.mxu0 %v866
    %892 = vmatprep.subr.mxu0 0.0
    %893 = vmatpush1.msra.mxu0 %v867
    %894 = vmatprep.subr.mxu0 0.0
    %895 = vmatpush1.msra.mxu0 %v868
    %896 = vmatprep.subr.mxu0 0.0
    %897 = vmatpush1.msra.mxu0 %v869
    %898 = vmatprep.subr.mxu0 0.0
    %899 = vmatpush1.msra.mxu0 %v870
    %900 = vmatprep.subr.mxu0 0.0
    %901 = vmatpush1.msra.mxu0 %v871
    %902 = vmatprep.subr.mxu0 0.0
    %903 = vmatpush1.msra.mxu0 %v872
    %904 = vmatprep.subr.mxu0 0.0
    %905 = vmatpush1.msra.mxu0 %v873
    %906 = vmatprep.subr.mxu0 0.0
    %907 = vmatpush1.msra.mxu0 0.0
    %908 = vmatprep.subr.mxu0 0.0
    %909 = vmatpush1.msra.mxu0 0.0
    %910 = vmatprep.subr.mxu0 0.0
    %911 = vmatpush1.msra.mxu0 0.0
    %912 = vmatprep.subr.mxu0 0.0
    %913 = vmatpush1.msra.mxu0 0.0
    %914 = vmatprep.subr.mxu0 0.0
    %915 = vmatpush1.msra.mxu0 0.0
    %916 = vmatprep.subr.mxu0 0.0
    %917 = vmatpush1.msra.mxu0 0.0
    %918 = vmatprep.subr.mxu0 0.0
    %919 = vmatpush1.msra.mxu0 0.0
    %920 = vmatprep.subr.mxu0 0.0
    %921 = vmatpush1.msra.mxu0 0.0
    %922 = vmatprep.subr.mxu0 0.0
    %923 = vmatpush1.msra.mxu0 0.0
    %924 = vmatprep.subr.mxu0 0.0
    %925 = vmatpush1.msra.mxu0 0.0
    %926 = vmatprep.subr.mxu0 0.0
    %927 = vmatpush1.msra.mxu0 0.0
    %928 = vmatprep.subr.mxu0 0.0
    %929 = vmatpush1.msra.mxu0 0.0
    %930 = vmatprep.subr.mxu0 0.0
    %931 = vmatpush1.msra.mxu0 0.0
    %932 = vmatprep.subr.mxu0 0.0
    %933 = vmatpush1.msra.mxu0 0.0
    %934 = vmatprep.subr.mxu0 0.0
    %935 = vmatpush1.msra.mxu0 0.0
    %936 = vmatprep.subr.mxu0 0.0
    %937 = vmatpush1.msra.mxu0 0.0
    %938 = vmatprep.subr.mxu0 0.0
    %939 = vmatpush1.msra.mxu0 0.0
    %940 = vmatprep.subr.mxu0 0.0
    %941 = vmatpush1.msra.mxu0 0.0
    %942 = vmatprep.subr.mxu0 0.0
    %943 = vmatpush1.msra.mxu0 0.0
    %944 = vmatprep.subr.mxu0 0.0
    %945 = vmatpush1.msra.mxu0 0.0
    %946 = vmatprep.subr.mxu0 0.0
    %947 = vmatpush1.msra.mxu0 0.0
    %948 = vmatprep.subr.mxu0 0.0
    %949 = vmatpush1.msra.mxu0 0.0
    %950 = vmatprep.subr.mxu0 0.0
    %951 = vmatpush1.msra.mxu0 0.0
    %952 = vmatprep.subr.mxu0 0.0
    %953 = vmatpush1.msra.mxu0 0.0
    %954 = vmatprep.mubr.f32.mxu0 0.0
    %955 = vmatmul.mubr.f32.gmra.mrb[0].mxu0 %v882
    %v956 = vpop.f32.mrb[0].mxu0
    %v957 = vadd.f32 %v879, %v956
    %v958 = vpop.f32.mrb[0].mxu0
    %959 = vmatprep.mubr.f32.mxu0 0.0
    %960 = vmatmul.mubr.f32.gmra.mrb[0].mxu0 %v885
    %v961 = vpop.f32.mrb[0].mxu0
    %v962 = vadd.f32 %v879, %v961
    %v963 = vpop.f32.mrb[0].mxu0
    %964 = vmatprep.mubr.f32.mxu0 0.0
    %965 = vmatmul.mubr.f32.gmra.mrb[0].mxu0 %v888
    %v966 = vpop.f32.mrb[0].mxu0
    %v967 = vadd.f32 %v879, %v966
    %v968 = vpop.f32.mrb[0].mxu0
    %969 = vdwg.mxu0
    %v970 = vmax.f32 %v957, 0.0
    %v971 = vmax.f32 %v962, 0.0
    %v972 = vmax.f32 %v967, 0.0
    %v973 = vld [vmem:[%s7] sm:$0xff]
    %v974 = vld [vmem:[%s7 + $0x8] sm:$0xff]
    %v975 = vld [vmem:[%s7 + $0x10] sm:$0xff]
    %v976 = vld [vmem:[%s7 + $0x18] sm:$0xff]
    %v977 = vld [vmem:[%s7 + $0x20] sm:$0xff]
    %v978 = vld [vmem:[%s7 + $0x28] sm:$0xff]
    %v979 = vld [vmem:[%s7 + $0x30] sm:$0xff]
    %v980 = vld [vmem:[%s7 + $0x38] sm:$0xff]
    %v981 = vld [vmem:[%s7 + $0x40] sm:$0xff]
    %v982 = vld [vmem:[%s7 + $0x48] sm:$0xff]
    %v983 = vld [vmem:[%s7 + $0x50] sm:$0xff]
    %v984 = vld [vmem:[%s7 + $0x58] sm:$0xff]
    %v985 = vld [vmem:[%s7 + $0x60] sm:$0xff]
    %v986 = vld [vmem:[%s7 + $0x68] sm:$0xff]
    %v987 = vld [vmem:[%s7 + $0x70] sm:$0xff]
    %v988 = vld [vmem:[%s7 + $0x78] sm:$0xff]
    %v989 = vld [vmem:[%s9] sm:$0x3]
    %v990 = vld [vmem:[#allocation6] sm:$0xff]
    %v991 = vld [vmem:[#allocation6 + $0x8] sm:$0xff]
    %v992 = vld [vmem:[#allocation6 + $0x10] sm:$0xff]
    %v993 = vld [vmem:[#allocation6 + $0x18] sm:$0xff]
    %v994 = vld [vmem:[#allocation6 + $0x20] sm:$0xff]
    %v995 = vld [vmem:[#allocation6 + $0x28] sm:$0xff]
    %v996 = vld [vmem:[#allocation6 + $0x30] sm:$0xff]
    %v997 = vld [vmem:[#allocation6 + $0x38] sm:$0xff]
    %v998 = vld [vmem:[%s10] sm:$0xff]
    %v1000 = vlaneseq
    %v1001 = vshrl.u32 %v1000, 7
    %v1002 = vsub.s32 0, %v1001
    %v1003 = vrot.slane %v989, %v1002
    %v1004 = vlaneseq
    %v1005 = vshrl.u32 %v1004, 7
    %v1006 = vsub.s32 1, %v1005
    %v1007 = vrot.slane %v989, %v1006
    %v1011 = vsel %vm283, %v970, 0
    %v1014 = vsel %vm283, %v971, 0
    %v1017 = vsel %vm283, %v972, 0
    %1019 = vmatprep.subr.mxu0 %v974
    %1020 = vmatpush1.msra.mxu0 %v973
    %1021 = vmatprep.subr.mxu0 %v976
    %1022 = vmatpush1.msra.mxu0 %v975
    %1023 = vmatprep.subr.mxu0 %v978
    %1024 = vmatpush1.msra.mxu0 %v977
    %1025 = vmatprep.subr.mxu0 %v980
    %1026 = vmatpush1.msra.mxu0 %v979
    %1027 = vmatprep.subr.mxu0 %v982
    %1028 = vmatpush1.msra.mxu0 %v981
    %1029 = vmatprep.subr.mxu0 %v984
    %1030 = vmatpush1.msra.mxu0 %v983
    %1031 = vmatprep.subr.mxu0 %v986
    %1032 = vmatpush1.msra.mxu0 %v985
    %1033 = vmatprep.subr.mxu0 %v988
    %1034 = vmatpush1.msra.mxu0 %v987
    %1035 = vmatprep.subr.mxu0 0.0
    %1036 = vmatpush1.msra.mxu0 0.0
    %1037 = vmatprep.subr.mxu0 0.0
    %1038 = vmatpush1.msra.mxu0 0.0
    %1039 = vmatprep.subr.mxu0 0.0
    %1040 = vmatpush1.msra.mxu0 0.0
    %1041 = vmatprep.subr.mxu0 0.0
    %1042 = vmatpush1.msra.mxu0 0.0
    %1043 = vmatprep.subr.mxu0 0.0
    %1044 = vmatpush1.msra.mxu0 0.0
    %1045 = vmatprep.subr.mxu0 0.0
    %1046 = vmatpush1.msra.mxu0 0.0
    %1047 = vmatprep.subr.mxu0 0.0
    %1048 = vmatpush1.msra.mxu0 0.0
    %1049 = vmatprep.subr.mxu0 0.0
    %1050 = vmatpush1.msra.mxu0 0.0
    %1051 = vmatprep.subr.mxu0 0.0
    %1052 = vmatpush1.msra.mxu0 0.0
    %1053 = vmatprep.subr.mxu0 0.0
    %1054 = vmatpush1.msra.mxu0 0.0
    %1055 = vmatprep.subr.mxu0 0.0
    %1056 = vmatpush1.msra.mxu0 0.0
    %1057 = vmatprep.subr.mxu0 0.0
    %1058 = vmatpush1.msra.mxu0 0.0
    %1059 = vmatprep.subr.mxu0 0.0
    %1060 = vmatpush1.msra.mxu0 0.0
    %1061 = vmatprep.subr.mxu0 0.0
    %1062 = vmatpush1.msra.mxu0 0.0
    %1063 = vmatprep.subr.mxu0 0.0
    %1064 = vmatpush1.msra.mxu0 0.0
    %1065 = vmatprep.subr.mxu0 0.0
    %1066 = vmatpush1.msra.mxu0 0.0
    %1067 = vmatprep.subr.mxu0 0.0
    %1068 = vmatpush1.msra.mxu0 0.0
    %1069 = vmatprep.subr.mxu0 0.0
    %1070 = vmatpush1.msra.mxu0 0.0
    %1071 = vmatprep.subr.mxu0 0.0
    %1072 = vmatpush1.msra.mxu0 0.0
    %1073 = vmatprep.subr.mxu0 0.0
    %1074 = vmatpush1.msra.mxu0 0.0
    %1075 = vmatprep.subr.mxu0 0.0
    %1076 = vmatpush1.msra.mxu0 0.0
    %1077 = vmatprep.subr.mxu0 0.0
    %1078 = vmatpush1.msra.mxu0 0.0
    %1079 = vmatprep.subr.mxu0 0.0
    %1080 = vmatpush1.msra.mxu0 0.0
    %1081 = vmatprep.subr.mxu0 0.0
    %1082 = vmatpush1.msra.mxu0 0.0
    %1083 = vmatprep.mubr.f32.mxu0 0.0
    %1084 = vmatmul.mubr.f32.gmra.mrb[0].mxu0 %v1011
    %v1085 = vpop.f32.mrb[0].mxu0
    %v1086 = vadd.f32 %v1003, %v1085
    %v1087 = vpop.f32.mrb[0].mxu0
    %v1088 = vadd.f32 %v1007, %v1087
    %1089 = vmatprep.mubr.f32.mxu0 0.0
    %1090 = vmatmul.mubr.f32.gmra.mrb[0].mxu0 %v1014
    %v1091 = vpop.f32.mrb[0].mxu0
    %v1092 = vadd.f32 %v1003, %v1091
    %v1093 = vpop.f32.mrb[0].mxu0
    %v1094 = vadd.f32 %v1007, %v1093
    %1095 = vmatprep.mubr.f32.mxu0 0.0
    %1096 = vmatmul.mubr.f32.gmra.mrb[0].mxu0 %v1017
    %v1097 = vpop.f32.mrb[0].mxu0
    %v1098 = vadd.f32 %v1003, %v1097
    %v1099 = vpop.f32.mrb[0].mxu0
    %v1100 = vadd.f32 %v1007, %v1099
    %1101 = vdwg.mxu0
    %v1104 = vrot.slane %v1098, 4
    %v1105 = vrot.slane %v1100, 4
    %1106 = vrot.lane.b32.xlu0 %v1104, 32
    %v1107 = vpop.permute.xlu0 %1106
    %1108 = vrot.lane.b32.xlu0 %v1105, 32
    %v1109 = vpop.permute.xlu0 %1108
    %v1110 = vsel %vm239, %v1107, %v1109
    %v1113 = vrot.slane %v1086, 4
    %1117 = vrot.lane.b32.xlu0 %v1092, 32
    %v1118 = vpop.permute.xlu0 %1117
    %1119 = vrot.lane.b32.xlu0 %v1094, 32
    %v1120 = vpop.permute.xlu0 %1119
    %v1121 = vsel %vm239, %v1118, %v1120
    %v1123 = vrot.slane %v1092, 4
    %v1124 = vrot.slane %v1094, 4
    %1125 = vrot.lane.b32.xlu0 %v1123, 32
    %v1126 = vpop.permute.xlu0 %1125
    %1127 = vrot.lane.b32.xlu0 %v1124, 32
    %v1128 = vpop.permute.xlu0 %1127
    %v1129 = vsel %vm239, %v1126, %v1128
    %1133 = vrot.lane.b32.xlu0 %v1086, 32
    %v1134 = vpop.permute.xlu0 %1133
    %1135 = vrot.lane.b32.xlu0 %v1088, 32
    %v1136 = vpop.permute.xlu0 %1135
    %v1137 = vsel %vm239, %v1134, %v1136
    %v1139 = vrot.slane %v1088, 4
    %1140 = vrot.lane.b32.xlu0 %v1113, 32
    %v1141 = vpop.permute.xlu0 %1140
    %1142 = vrot.lane.b32.xlu0 %v1139, 32
    %v1143 = vpop.permute.xlu0 %1142
    %v1144 = vsel %vm239, %v1141, %v1143
    %v1146 = vsel %vm276, %v1086, %v1110
    %v1147 = vsel %vm276, %v1113, %v1121
    %v1148 = vsel %vm276, %v1092, %v1129
    %v1149 = vsel %vm276, %v1123, %v1137
    %v1150 = vsel %vm276, %v1098, %v1144
    %1151 = vmatprep.subr.mxu0 0.0
    %1152 = vmatpush1.msra.mxu0 %v990
    %1153 = vmatprep.subr.mxu0 0.0
    %1154 = vmatpush1.msra.mxu0 %v991
    %1155 = vmatprep.subr.mxu0 0.0
    %1156 = vmatpush1.msra.mxu0 %v992
    %1157 = vmatprep.subr.mxu0 0.0
    %1158 = vmatpush1.msra.mxu0 %v993
    %1159 = vmatprep.subr.mxu0 0.0
    %1160 = vmatpush1.msra.mxu0 %v994
    %1161 = vmatprep.subr.mxu0 0.0
    %1162 = vmatpush1.msra.mxu0 %v995
    %1163 = vmatprep.subr.mxu0 0.0
    %1164 = vmatpush1.msra.mxu0 %v996
    %1165 = vmatprep.subr.mxu0 0.0
    %1166 = vmatpush1.msra.mxu0 %v997
    %1167 = vmatprep.subr.mxu0 0.0
    %1168 = vmatpush1.msra.mxu0 0.0
    %1169 = vmatprep.subr.mxu0 0.0
    %1170 = vmatpush1.msra.mxu0 0.0
    %1171 = vmatprep.subr.mxu0 0.0
    %1172 = vmatpush1.msra.mxu0 0.0
    %1173 = vmatprep.subr.mxu0 0.0
    %1174 = vmatpush1.msra.mxu0 0.0
    %1175 = vmatprep.subr.mxu0 0.0
    %1176 = vmatpush1.msra.mxu0 0.0
    %1177 = vmatprep.subr.mxu0 0.0
    %1178 = vmatpush1.msra.mxu0 0.0
    %1179 = vmatprep.subr.mxu0 0.0
    %1180 = vmatpush1.msra.mxu0 0.0
    %1181 = vmatprep.subr.mxu0 0.0
    %1182 = vmatpush1.msra.mxu0 0.0
    %1183 = vmatprep.subr.mxu0 0.0
    %1184 = vmatpush1.msra.mxu0 0.0
    %1185 = vmatprep.subr.mxu0 0.0
    %1186 = vmatpush1.msra.mxu0 0.0
    %1187 = vmatprep.subr.mxu0 0.0
    %1188 = vmatpush1.msra.mxu0 0.0
    %1189 = vmatprep.subr.mxu0 0.0
    %1190 = vmatpush1.msra.mxu0 0.0
    %1191 = vmatprep.subr.mxu0 0.0
    %1192 = vmatpush1.msra.mxu0 0.0
    %1193 = vmatprep.subr.mxu0 0.0
    %1194 = vmatpush1.msra.mxu0 0.0
    %1195 = vmatprep.subr.mxu0 0.0
    %1196 = vmatpush1.msra.mxu0 0.0
    %1197 = vmatprep.subr.mxu0 0.0
    %1198 = vmatpush1.msra.mxu0 0.0
    %1199 = vmatprep.subr.mxu0 0.0
    %1200 = vmatpush1.msra.mxu0 0.0
    %1201 = vmatprep.subr.mxu0 0.0
    %1202 = vmatpush1.msra.mxu0 0.0
    %1203 = vmatprep.subr.mxu0 0.0
    %1204 = vmatpush1.msra.mxu0 0.0
    %1205 = vmatprep.subr.mxu0 0.0
    %1206 = vmatpush1.msra.mxu0 0.0
    %1207 = vmatprep.subr.mxu0 0.0
    %1208 = vmatpush1.msra.mxu0 0.0
    %1209 = vmatprep.subr.mxu0 0.0
    %1210 = vmatpush1.msra.mxu0 0.0
    %1211 = vmatprep.subr.mxu0 0.0
    %1212 = vmatpush1.msra.mxu0 0.0
    %1213 = vmatprep.subr.mxu0 0.0
    %1214 = vmatpush1.msra.mxu0 0.0
    %1215 = vmatprep.mubr.f32.mxu0 0.0
    %1216 = vmatmul.mubr.f32.gmra.mrb[0].mxu0 %v285
    %v1217 = vpop.f32.mrb[0].mxu0
    %v1218 = vadd.f32 0.0, %v1217
    %v1219 = vpop.f32.mrb[0].mxu0
    %1220 = vdwg.mxu0
    %v1221 = vadd.f32 %v1146, %v1218
    %v1222 = vmul.f32 %v1221, 0.5
    %v1223 = vtanh.pop %v1222
    %v1224 = vmul.f32 %v1223, 0.5
    %v1225 = vadd.f32 %v1224, 0.5
    %1227 = vrot.lane.b32.xlu0 %v998, 64
    %v1228 = vpop.permute.xlu0 %1227
    %v1230 = vadd.f32 %v1218, %v1228
    %1232 = vrot.lane.b32.xlu0 %v1230, 64
    %v1233 = vpop.permute.xlu0 %1232
    %v1235 = vmul.f32 %v1225, %v1233
    %1237 = vrot.lane.b32.xlu0 %v1235, 64
    %v1238 = vpop.permute.xlu0 %1237
    %v1240 = vadd.f32 %v1146, %v1238
    %v1241 = vtanh.pop %v1240
    %v1242 = vsub.f32 0.0, %v1241
    %1244 = vrot.lane.b32.xlu0 %v1242, 96
    %v1245 = vpop.permute.xlu0 %1244
    %v1247 = vmul.f32 %v1225, %v1245
    %1249 = vrot.lane.b32.xlu0 %v1247, 32
    %v1250 = vpop.permute.xlu0 %1249
    %v1252 = vadd.f32 %v1241, %v1250
    %1254 = vrot.lane.b32.xlu0 %v1252, 64
    %v1255 = vpop.permute.xlu0 %1254
    %1257 = vrot.lane.b32.xlu0 %v1252, 96
    %v1258 = vpop.permute.xlu0 %1257
    %v1260 = vsel %vm239, %v1255, %v1258
    %v1261 = vmul.f32 %v1260, %v111
    %v1263 = vsel %vm283, %v1261, 0
    %1265 = vmatprep.subr.mxu0 0.0
    %1266 = vmatpush1.msra.mxu0 %v990
    %1267 = vmatprep.subr.mxu0 0.0
    %1268 = vmatpush1.msra.mxu0 %v991
    %1269 = vmatprep.subr.mxu0 0.0
    %1270 = vmatpush1.msra.mxu0 %v992
    %1271 = vmatprep.subr.mxu0 0.0
    %1272 = vmatpush1.msra.mxu0 %v993
    %1273 = vmatprep.subr.mxu0 0.0
    %1274 = vmatpush1.msra.mxu0 %v994
    %1275 = vmatprep.subr.mxu0 0.0
    %1276 = vmatpush1.msra.mxu0 %v995
    %1277 = vmatprep.subr.mxu0 0.0
    %1278 = vmatpush1.msra.mxu0 %v996
    %1279 = vmatprep.subr.mxu0 0.0
    %1280 = vmatpush1.msra.mxu0 %v997
    %1281 = vmatprep.subr.mxu0 0.0
    %1282 = vmatpush1.msra.mxu0 0.0
    %1283 = vmatprep.subr.mxu0 0.0
    %1284 = vmatpush1.msra.mxu0 0.0
    %1285 = vmatprep.subr.mxu0 0.0
    %1286 = vmatpush1.msra.mxu0 0.0
    %1287 = vmatprep.subr.mxu0 0.0
    %1288 = vmatpush1.msra.mxu0 0.0
    %1289 = vmatprep.subr.mxu0 0.0
    %1290 = vmatpush1.msra.mxu0 0.0
    %1291 = vmatprep.subr.mxu0 0.0
    %1292 = vmatpush1.msra.mxu0 0.0
    %1293 = vmatprep.subr.mxu0 0.0
    %1294 = vmatpush1.msra.mxu0 0.0
    %1295 = vmatprep.subr.mxu0 0.0
    %1296 = vmatpush1.msra.mxu0 0.0
    %1297 = vmatprep.subr.mxu0 0.0
    %1298 = vmatpush1.msra.mxu0 0.0
    %1299 = vmatprep.subr.mxu0 0.0
    %1300 = vmatpush1.msra.mxu0 0.0
    %1301 = vmatprep.subr.mxu0 0.0
    %1302 = vmatpush1.msra.mxu0 0.0
    %1303 = vmatprep.subr.mxu0 0.0
    %1304 = vmatpush1.msra.mxu0 0.0
    %1305 = vmatprep.subr.mxu0 0.0
    %1306 = vmatpush1.msra.mxu0 0.0
    %1307 = vmatprep.subr.mxu0 0.0
    %1308 = vmatpush1.msra.mxu0 0.0
    %1309 = vmatprep.subr.mxu0 0.0
    %1310 = vmatpush1.msra.mxu0 0.0
    %1311 = vmatprep.subr.mxu0 0.0
    %1312 = vmatpush1.msra.mxu0 0.0
    %1313 = vmatprep.subr.mxu0 0.0
    %1314 = vmatpush1.msra.mxu0 0.0
    %1315 = vmatprep.subr.mxu0 0.0
    %1316 = vmatpush1.msra.mxu0 0.0
    %1317 = vmatprep.subr.mxu0 0.0
    %1318 = vmatpush1.msra.mxu0 0.0
    %1319 = vmatprep.subr.mxu0 0.0
    %1320 = vmatpush1.msra.mxu0 0.0
    %1321 = vmatprep.subr.mxu0 0.0
    %1322 = vmatpush1.msra.mxu0 0.0
    %1323 = vmatprep.subr.mxu0 0.0
    %1324 = vmatpush1.msra.mxu0 0.0
    %1325 = vmatprep.subr.mxu0 0.0
    %1326 = vmatpush1.msra.mxu0 0.0
    %1327 = vmatprep.subr.mxu0 0.0
    %1328 = vmatpush1.msra.mxu0 0.0
    %1329 = vmatprep.mubr.f32.mxu0 0.0
    %1330 = vmatmul.mubr.f32.gmra.mrb[0].mxu0 %v1263
    %v1331 = vpop.f32.mrb[0].mxu0
    %v1332 = vadd.f32 0.0, %v1331
    %v1333 = vpop.f32.mrb[0].mxu0
    %1334 = vdwg.mxu0
    %v1335 = vadd.f32 %v1147, %v1332
    %v1336 = vmul.f32 %v1335, 0.5
    %v1337 = vtanh.pop %v1336
    %v1338 = vmul.f32 %v1337, 0.5
    %v1339 = vadd.f32 %v1338, 0.5
    %v1340 = vadd.f32 %v1332, %v1228
    %1342 = vrot.lane.b32.xlu0 %v1340, 64
    %v1343 = vpop.permute.xlu0 %1342
    %v1345 = vmul.f32 %v1339, %v1343
    %1347 = vrot.lane.b32.xlu0 %v1345, 64
    %v1348 = vpop.permute.xlu0 %1347
    %v1350 = vadd.f32 %v1147, %v1348
    %v1351 = vtanh.pop %v1350
    %v1352 = vsub.f32 %v1252, %v1351
    %1354 = vrot.lane.b32.xlu0 %v1352, 96
    %v1355 = vpop.permute.xlu0 %1354
    %v1357 = vmul.f32 %v1339, %v1355
    %1359 = vrot.lane.b32.xlu0 %v1357, 32
    %v1360 = vpop.permute.xlu0 %1359
    %v1362 = vadd.f32 %v1351, %v1360
    %1364 = vrot.lane.b32.xlu0 %v1362, 64
    %v1365 = vpop.permute.xlu0 %1364
    %1367 = vrot.lane.b32.xlu0 %v1362, 96
    %v1368 = vpop.permute.xlu0 %1367
    %v1370 = vsel %vm239, %v1365, %v1368
    %v1371 = vmul.f32 %v1370, %v111
    %v1373 = vsel %vm283, %v1371, 0
    %1375 = vmatprep.subr.mxu0 0.0
    %1376 = vmatpush1.msra.mxu0 %v990
    %1377 = vmatprep.subr.mxu0 0.0
    %1378 = vmatpush1.msra.mxu0 %v991
    %1379 = vmatprep.subr.mxu0 0.0
    %1380 = vmatpush1.msra.mxu0 %v992
    %1381 = vmatprep.subr.mxu0 0.0
    %1382 = vmatpush1.msra.mxu0 %v993
    %1383 = vmatprep.subr.mxu0 0.0
    %1384 = vmatpush1.msra.mxu0 %v994
    %1385 = vmatprep.subr.mxu0 0.0
    %1386 = vmatpush1.msra.mxu0 %v995
    %1387 = vmatprep.subr.mxu0 0.0
    %1388 = vmatpush1.msra.mxu0 %v996
    %1389 = vmatprep.subr.mxu0 0.0
    %1390 = vmatpush1.msra.mxu0 %v997
    %1391 = vmatprep.subr.mxu0 0.0
    %1392 = vmatpush1.msra.mxu0 0.0
    %1393 = vmatprep.subr.mxu0 0.0
    %1394 = vmatpush1.msra.mxu0 0.0
    %1395 = vmatprep.subr.mxu0 0.0
    %1396 = vmatpush1.msra.mxu0 0.0
    %1397 = vmatprep.subr.mxu0 0.0
    %1398 = vmatpush1.msra.mxu0 0.0
    %1399 = vmatprep.subr.mxu0 0.0
    %1400 = vmatpush1.msra.mxu0 0.0
    %1401 = vmatprep.subr.mxu0 0.0
    %1402 = vmatpush1.msra.mxu0 0.0
    %1403 = vmatprep.subr.mxu0 0.0
    %1404 = vmatpush1.msra.mxu0 0.0
    %1405 = vmatprep.subr.mxu0 0.0
    %1406 = vmatpush1.msra.mxu0 0.0
    %1407 = vmatprep.subr.mxu0 0.0
    %1408 = vmatpush1.msra.mxu0 0.0
    %1409 = vmatprep.subr.mxu0 0.0
    %1410 = vmatpush1.msra.mxu0 0.0
    %1411 = vmatprep.subr.mxu0 0.0
    %1412 = vmatpush1.msra.mxu0 0.0
    %1413 = vmatprep.subr.mxu0 0.0
    %1414 = vmatpush1.msra.mxu0 0.0
    %1415 = vmatprep.subr.mxu0 0.0
    %1416 = vmatpush1.msra.mxu0 0.0
    %1417 = vmatprep.subr.mxu0 0.0
    %1418 = vmatpush1.msra.mxu0 0.0
    %1419 = vmatprep.subr.mxu0 0.0
    %1420 = vmatpush1.msra.mxu0 0.0
    %1421 = vmatprep.subr.mxu0 0.0
    %1422 = vmatpush1.msra.mxu0 0.0
    %1423 = vmatprep.subr.mxu0 0.0
    %1424 = vmatpush1.msra.mxu0 0.0
    %1425 = vmatprep.subr.mxu0 0.0
    %1426 = vmatpush1.msra.mxu0 0.0
    %1427 = vmatprep.subr.mxu0 0.0
    %1428 = vmatpush1.msra.mxu0 0.0
    %1429 = vmatprep.subr.mxu0 0.0
    %1430 = vmatpush1.msra.mxu0 0.0
    %1431 = vmatprep.subr.mxu0 0.0
    %1432 = vmatpush1.msra.mxu0 0.0
    %1433 = vmatprep.subr.mxu0 0.0
    %1434 = vmatpush1.msra.mxu0 0.0
    %1435 = vmatprep.subr.mxu0 0.0
    %1436 = vmatpush1.msra.mxu0 0.0
    %1437 = vmatprep.subr.mxu0 0.0
    %1438 = vmatpush1.msra.mxu0 0.0
    %1439 = vmatprep.mubr.f32.mxu0 0.0
    %1440 = vmatmul.mubr.f32.gmra.mrb[0].mxu0 %v1373
    %v1441 = vpop.f32.mrb[0].mxu0
    %v1442 = vadd.f32 0.0, %v1441
    %v1443 = vpop.f32.mrb[0].mxu0
    %1444 = vdwg.mxu0
    %v1445 = vadd.f32 %v1148, %v1442
    %v1446 = vmul.f32 %v1445, 0.5
    %v1447 = vtanh.pop %v1446
    %v1448 = vmul.f32 %v1447, 0.5
    %v1449 = vadd.f32 %v1448, 0.5
    %v1450 = vadd.f32 %v1442, %v1228
    %1452 = vrot.lane.b32.xlu0 %v1450, 64
    %v1453 = vpop.permute.xlu0 %1452
    %v1455 = vmul.f32 %v1449, %v1453
    %1457 = vrot.lane.b32.xlu0 %v1455, 64
    %v1458 = vpop.permute.xlu0 %1457
    %v1460 = vadd.f32 %v1148, %v1458
    %v1461 = vtanh.pop %v1460
    %v1462 = vsub.f32 %v1362, %v1461
    %1464 = vrot.lane.b32.xlu0 %v1462, 96
    %v1465 = vpop.permute.xlu0 %1464
    %v1467 = vmul.f32 %v1449, %v1465
    %1469 = vrot.lane.b32.xlu0 %v1467, 32
    %v1470 = vpop.permute.xlu0 %1469
    %v1472 = vadd.f32 %v1461, %v1470
    %1474 = vrot.lane.b32.xlu0 %v1472, 64
    %v1475 = vpop.permute.xlu0 %1474
    %1477 = vrot.lane.b32.xlu0 %v1472, 96
    %v1478 = vpop.permute.xlu0 %1477
    %v1480 = vsel %vm239, %v1475, %v1478
    %v1481 = vmul.f32 %v1480, %v111
    %v1483 = vsel %vm283, %v1481, 0
    %1485 = vmatprep.subr.mxu0 0.0
    %1486 = vmatpush1.msra.mxu0 %v990
    %1487 = vmatprep.subr.mxu0 0.0
    %1488 = vmatpush1.msra.mxu0 %v991
    %1489 = vmatprep.subr.mxu0 0.0
    %1490 = vmatpush1.msra.mxu0 %v992
    %1491 = vmatprep.subr.mxu0 0.0
    %1492 = vmatpush1.msra.mxu0 %v993
    %1493 = vmatprep.subr.mxu0 0.0
    %1494 = vmatpush1.msra.mxu0 %v994
    %1495 = vmatprep.subr.mxu0 0.0
    %1496 = vmatpush1.msra.mxu0 %v995
    %1497 = vmatprep.subr.mxu0 0.0
    %1498 = vmatpush1.msra.mxu0 %v996
    %1499 = vmatprep.subr.mxu0 0.0
    %1500 = vmatpush1.msra.mxu0 %v997
    %1501 = vmatprep.subr.mxu0 0.0
    %1502 = vmatpush1.msra.mxu0 0.0
    %1503 = vmatprep.subr.mxu0 0.0
    %1504 = vmatpush1.msra.mxu0 0.0
    %1505 = vmatprep.subr.mxu0 0.0
    %1506 = vmatpush1.msra.mxu0 0.0
    %1507 = vmatprep.subr.mxu0 0.0
    %1508 = vmatpush1.msra.mxu0 0.0
    %1509 = vmatprep.subr.mxu0 0.0
    %1510 = vmatpush1.msra.mxu0 0.0
    %1511 = vmatprep.subr.mxu0 0.0
    %1512 = vmatpush1.msra.mxu0 0.0
    %1513 = vmatprep.subr.mxu0 0.0
    %1514 = vmatpush1.msra.mxu0 0.0
    %1515 = vmatprep.subr.mxu0 0.0
    %1516 = vmatpush1.msra.mxu0 0.0
    %1517 = vmatprep.subr.mxu0 0.0
    %1518 = vmatpush1.msra.mxu0 0.0
    %1519 = vmatprep.subr.mxu0 0.0
    %1520 = vmatpush1.msra.mxu0 0.0
    %1521 = vmatprep.subr.mxu0 0.0
    %1522 = vmatpush1.msra.mxu0 0.0
    %1523 = vmatprep.subr.mxu0 0.0
    %1524 = vmatpush1.msra.mxu0 0.0
    %1525 = vmatprep.subr.mxu0 0.0
    %1526 = vmatpush1.msra.mxu0 0.0
    %1527 = vmatprep.subr.mxu0 0.0
    %1528 = vmatpush1.msra.mxu0 0.0
    %1529 = vmatprep.subr.mxu0 0.0
    %1530 = vmatpush1.msra.mxu0 0.0
    %1531 = vmatprep.subr.mxu0 0.0
    %1532 = vmatpush1.msra.mxu0 0.0
    %1533 = vmatprep.subr.mxu0 0.0
    %1534 = vmatpush1.msra.mxu0 0.0
    %1535 = vmatprep.subr.mxu0 0.0
    %1536 = vmatpush1.msra.mxu0 0.0
    %1537 = vmatprep.subr.mxu0 0.0
    %1538 = vmatpush1.msra.mxu0 0.0
    %1539 = vmatprep.subr.mxu0 0.0
    %1540 = vmatpush1.msra.mxu0 0.0
    %1541 = vmatprep.subr.mxu0 0.0
    %1542 = vmatpush1.msra.mxu0 0.0
    %1543 = vmatprep.subr.mxu0 0.0
    %1544 = vmatpush1.msra.mxu0 0.0
    %1545 = vmatprep.subr.mxu0 0.0
    %1546 = vmatpush1.msra.mxu0 0.0
    %1547 = vmatprep.subr.mxu0 0.0
    %1548 = vmatpush1.msra.mxu0 0.0
    %1549 = vmatprep.mubr.f32.mxu0 0.0
    %1550 = vmatmul.mubr.f32.gmra.mrb[0].mxu0 %v1483
    %v1551 = vpop.f32.mrb[0].mxu0
    %v1552 = vadd.f32 0.0, %v1551
    %v1553 = vpop.f32.mrb[0].mxu0
    %1554 = vdwg.mxu0
    %v1555 = vadd.f32 %v1149, %v1552
    %v1556 = vmul.f32 %v1555, 0.5
    %v1557 = vtanh.pop %v1556
    %v1558 = vmul.f32 %v1557, 0.5
    %v1559 = vadd.f32 %v1558, 0.5
    %v1560 = vadd.f32 %v1552, %v1228
    %1562 = vrot.lane.b32.xlu0 %v1560, 64
    %v1563 = vpop.permute.xlu0 %1562
    %v1565 = vmul.f32 %v1559, %v1563
    %1567 = vrot.lane.b32.xlu0 %v1565, 64
    %v1568 = vpop.permute.xlu0 %1567
    %v1570 = vadd.f32 %v1149, %v1568
    %v1571 = vtanh.pop %v1570
    %v1572 = vsub.f32 %v1472, %v1571
    %1574 = vrot.lane.b32.xlu0 %v1572, 96
    %v1575 = vpop.permute.xlu0 %1574
    %v1577 = vmul.f32 %v1559, %v1575
    %1579 = vrot.lane.b32.xlu0 %v1577, 32
    %v1580 = vpop.permute.xlu0 %1579
    %v1582 = vadd.f32 %v1571, %v1580
    %1584 = vrot.lane.b32.xlu0 %v1582, 64
    %v1585 = vpop.permute.xlu0 %1584
    %1587 = vrot.lane.b32.xlu0 %v1582, 96
    %v1588 = vpop.permute.xlu0 %1587
    %v1590 = vsel %vm239, %v1585, %v1588
    %v1591 = vmul.f32 %v1590, %v111
    %v1593 = vsel %vm283, %v1591, 0
    %1595 = vmatprep.subr.mxu0 0.0
    %1596 = vmatpush1.msra.mxu0 %v990
    %1597 = vmatprep.subr.mxu0 0.0
    %1598 = vmatpush1.msra.mxu0 %v991
    %1599 = vmatprep.subr.mxu0 0.0
    %1600 = vmatpush1.msra.mxu0 %v992
    %1601 = vmatprep.subr.mxu0 0.0
    %1602 = vmatpush1.msra.mxu0 %v993
    %1603 = vmatprep.subr.mxu0 0.0
    %1604 = vmatpush1.msra.mxu0 %v994
    %1605 = vmatprep.subr.mxu0 0.0
    %1606 = vmatpush1.msra.mxu0 %v995
    %1607 = vmatprep.subr.mxu0 0.0
    %1608 = vmatpush1.msra.mxu0 %v996
    %1609 = vmatprep.subr.mxu0 0.0
    %1610 = vmatpush1.msra.mxu0 %v997
    %1611 = vmatprep.subr.mxu0 0.0
    %1612 = vmatpush1.msra.mxu0 0.0
    %1613 = vmatprep.subr.mxu0 0.0
    %1614 = vmatpush1.msra.mxu0 0.0
    %1615 = vmatprep.subr.mxu0 0.0
    %1616 = vmatpush1.msra.mxu0 0.0
    %1617 = vmatprep.subr.mxu0 0.0
    %1618 = vmatpush1.msra.mxu0 0.0
    %1619 = vmatprep.subr.mxu0 0.0
    %1620 = vmatpush1.msra.mxu0 0.0
    %1621 = vmatprep.subr.mxu0 0.0
    %1622 = vmatpush1.msra.mxu0 0.0
    %1623 = vmatprep.subr.mxu0 0.0
    %1624 = vmatpush1.msra.mxu0 0.0
    %1625 = vmatprep.subr.mxu0 0.0
    %1626 = vmatpush1.msra.mxu0 0.0
    %1627 = vmatprep.subr.mxu0 0.0
    %1628 = vmatpush1.msra.mxu0 0.0
    %1629 = vmatprep.subr.mxu0 0.0
    %1630 = vmatpush1.msra.mxu0 0.0
    %1631 = vmatprep.subr.mxu0 0.0
    %1632 = vmatpush1.msra.mxu0 0.0
    %1633 = vmatprep.subr.mxu0 0.0
    %1634 = vmatpush1.msra.mxu0 0.0
    %1635 = vmatprep.subr.mxu0 0.0
    %1636 = vmatpush1.msra.mxu0 0.0
    %1637 = vmatprep.subr.mxu0 0.0
    %1638 = vmatpush1.msra.mxu0 0.0
    %1639 = vmatprep.subr.mxu0 0.0
    %1640 = vmatpush1.msra.mxu0 0.0
    %1641 = vmatprep.subr.mxu0 0.0
    %1642 = vmatpush1.msra.mxu0 0.0
    %1643 = vmatprep.subr.mxu0 0.0
    %1644 = vmatpush1.msra.mxu0 0.0
    %1645 = vmatprep.subr.mxu0 0.0
    %1646 = vmatpush1.msra.mxu0 0.0
    %1647 = vmatprep.subr.mxu0 0.0
    %1648 = vmatpush1.msra.mxu0 0.0
    %1649 = vmatprep.subr.mxu0 0.0
    %1650 = vmatpush1.msra.mxu0 0.0
    %1651 = vmatprep.subr.mxu0 0.0
    %1652 = vmatpush1.msra.mxu0 0.0
    %1653 = vmatprep.subr.mxu0 0.0
    %1654 = vmatpush1.msra.mxu0 0.0
    %1655 = vmatprep.subr.mxu0 0.0
    %1656 = vmatpush1.msra.mxu0 0.0
    %1657 = vmatprep.subr.mxu0 0.0
    %1658 = vmatpush1.msra.mxu0 0.0
    %1659 = vmatprep.mubr.f32.mxu0 0.0
    %1660 = vmatmul.mubr.f32.gmra.mrb[0].mxu0 %v1593
    %v1661 = vpop.f32.mrb[0].mxu0
    %v1662 = vadd.f32 0.0, %v1661
    %v1663 = vpop.f32.mrb[0].mxu0
    %1664 = vdwg.mxu0
    %v1665 = vadd.f32 %v1150, %v1662
    %v1666 = vmul.f32 %v1665, 0.5
    %v1667 = vtanh.pop %v1666
    %v1668 = vmul.f32 %v1667, 0.5
    %v1669 = vadd.f32 %v1668, 0.5
    %v1670 = vadd.f32 %v1662, %v1228
    %1672 = vrot.lane.b32.xlu0 %v1670, 64
    %v1673 = vpop.permute.xlu0 %1672
    %v1675 = vmul.f32 %v1669, %v1673
    %1677 = vrot.lane.b32.xlu0 %v1675, 64
    %v1678 = vpop.permute.xlu0 %1677
    %v1680 = vadd.f32 %v1150, %v1678
    %v1681 = vtanh.pop %v1680
    %v1682 = vsub.f32 %v1582, %v1681
    %1684 = vrot.lane.b32.xlu0 %v1682, 96
    %v1685 = vpop.permute.xlu0 %1684
    %v1687 = vmul.f32 %v1669, %v1685
    %1689 = vrot.lane.b32.xlu0 %v1687, 32
    %v1690 = vpop.permute.xlu0 %1689
    %v1692 = vadd.f32 %v1681, %v1690
    %v1694 = vrot.slane %v1692, 4
    %1695 = vrot.lane.b32.xlu0 %v1694, 96
    %v1696 = vpop.permute.xlu0 %1695
    %v1698 = vsel %vm239, %v1255, %v1696
    %v1699 = vrot.slane %v1582, 4
    %1700 = vrot.lane.b32.xlu0 %v1699, 96
    %v1701 = vpop.permute.xlu0 %1700
    %v1703 = vsel %vm239, %v1365, %v1701
    %v1704 = vrot.slane %v1472, 4
    %1705 = vrot.lane.b32.xlu0 %v1704, 96
    %v1706 = vpop.permute.xlu0 %1705
    %v1708 = vsel %vm239, %v1475, %v1706
    %v1709 = vrot.slane %v1362, 4
    %1710 = vrot.lane.b32.xlu0 %v1709, 96
    %v1711 = vpop.permute.xlu0 %1710
    %v1713 = vsel %vm239, %v1585, %v1711
    %1714 = vrot.lane.b32.xlu0 %v1692, 64
    %v1715 = vpop.permute.xlu0 %1714
    %v1717 = vrot.slane %v1252, 4
    %1718 = vrot.lane.b32.xlu0 %v1717, 96
    %v1719 = vpop.permute.xlu0 %1718
    %v1721 = vsel %vm239, %v1715, %v1719
    %v1723 = vrot.slane %v1703, 4
    %v1726 = vrot.slane %v1713, 4
    %v1728 = vsel %vm276, %v1698, %v1723
    %v1729 = vsel %vm276, %v1708, %v1726
    %v1730 = vld [vmem:[%s11] sm:$0xff]
    %v1731 = vld [vmem:[%s11 + $0x8] sm:$0xff]
    %v1732 = vld [vmem:[%s11 + $0x10] sm:$0xff]
    %v1733 = vld [vmem:[%s11 + $0x18] sm:$0xff]
    %v1734 = vld [vmem:[%s11 + $0x20] sm:$0xff]
    %v1735 = vld [vmem:[%s11 + $0x28] sm:$0xff]
    %v1736 = vld [vmem:[%s11 + $0x30] sm:$0xff]
    %v1737 = vld [vmem:[%s11 + $0x38] sm:$0xff]
    %v1738 = vld [vmem:[#allocation7] sm:$0x1]
    %v1740 = vlaneseq
    %v1741 = vshrl.u32 %v1740, 7
    %v1742 = vsub.s32 0, %v1741
    %v1743 = vrot.slane %v1738, %v1742
    %v1746 = vsel %vm283, %v1728, 0
    %v1749 = vsel %vm283, %v1729, 0
    %v1752 = vsel %vm283, %v1721, 0
    %1754 = vmatprep.subr.mxu0 0.0
    %1755 = vmatpush1.msra.mxu0 %v1730
    %1756 = vmatprep.subr.mxu0 0.0
    %1757 = vmatpush1.msra.mxu0 %v1731
    %1758 = vmatprep.subr.mxu0 0.0
    %1759 = vmatpush1.msra.mxu0 %v1732
    %1760 = vmatprep.subr.mxu0 0.0
    %1761 = vmatpush1.msra.mxu0 %v1733
    %1762 = vmatprep.subr.mxu0 0.0
    %1763 = vmatpush1.msra.mxu0 %v1734
    %1764 = vmatprep.subr.mxu0 0.0
    %1765 = vmatpush1.msra.mxu0 %v1735
    %1766 = vmatprep.subr.mxu0 0.0
    %1767 = vmatpush1.msra.mxu0 %v1736
    %1768 = vmatprep.subr.mxu0 0.0
    %1769 = vmatpush1.msra.mxu0 %v1737
    %1770 = vmatprep.subr.mxu0 0.0
    %1771 = vmatpush1.msra.mxu0 0.0
    %1772 = vmatprep.subr.mxu0 0.0
    %1773 = vmatpush1.msra.mxu0 0.0
    %1774 = vmatprep.subr.mxu0 0.0
    %1775 = vmatpush1.msra.mxu0 0.0
    %1776 = vmatprep.subr.mxu0 0.0
    %1777 = vmatpush1.msra.mxu0 0.0
    %1778 = vmatprep.subr.mxu0 0.0
    %1779 = vmatpush1.msra.mxu0 0.0
    %1780 = vmatprep.subr.mxu0 0.0
    %1781 = vmatpush1.msra.mxu0 0.0
    %1782 = vmatprep.subr.mxu0 0.0
    %1783 = vmatpush1.msra.mxu0 0.0
    %1784 = vmatprep.subr.mxu0 0.0
    %1785 = vmatpush1.msra.mxu0 0.0
    %1786 = vmatprep.subr.mxu0 0.0
    %1787 = vmatpush1.msra.mxu0 0.0
    %1788 = vmatprep.subr.mxu0 0.0
    %1789 = vmatpush1.msra.mxu0 0.0
    %1790 = vmatprep.subr.mxu0 0.0
    %1791 = vmatpush1.msra.mxu0 0.0
    %1792 = vmatprep.subr.mxu0 0.0
    %1793 = vmatpush1.msra.mxu0 0.0
    %1794 = vmatprep.subr.mxu0 0.0
    %1795 = vmatpush1.msra.mxu0 0.0
    %1796 = vmatprep.subr.mxu0 0.0
    %1797 = vmatpush1.msra.mxu0 0.0
    %1798 = vmatprep.subr.mxu0 0.0
    %1799 = vmatpush1.msra.mxu0 0.0
    %1800 = vmatprep.subr.mxu0 0.0
    %1801 = vmatpush1.msra.mxu0 0.0
    %1802 = vmatprep.subr.mxu0 0.0
    %1803 = vmatpush1.msra.mxu0 0.0
    %1804 = vmatprep.subr.mxu0 0.0
    %1805 = vmatpush1.msra.mxu0 0.0
    %1806 = vmatprep.subr.mxu0 0.0
    %1807 = vmatpush1.msra.mxu0 0.0
    %1808 = vmatprep.subr.mxu0 0.0
    %1809 = vmatpush1.msra.mxu0 0.0
    %1810 = vmatprep.subr.mxu0 0.0
    %1811 = vmatpush1.msra.mxu0 0.0
    %1812 = vmatprep.subr.mxu0 0.0
    %1813 = vmatpush1.msra.mxu0 0.0
    %1814 = vmatprep.subr.mxu0 0.0
    %1815 = vmatpush1.msra.mxu0 0.0
    %1816 = vmatprep.subr.mxu0 0.0
    %1817 = vmatpush1.msra.mxu0 0.0
    %1818 = vmatprep.mubr.f32.mxu0 0.0
    %1819 = vmatmul.mubr.f32.gmra.mrb[0].mxu0 %v1746
    %v1820 = vpop.f32.mrb[0].mxu0
    %v1821 = vadd.f32 %v1743, %v1820
    %v1822 = vpop.f32.mrb[0].mxu0
    %1823 = vmatprep.mubr.f32.mxu0 0.0
    %1824 = vmatmul.mubr.f32.gmra.mrb[0].mxu0 %v1749
    %v1825 = vpop.f32.mrb[0].mxu0
    %v1826 = vadd.f32 %v1743, %v1825
    %v1827 = vpop.f32.mrb[0].mxu0
    %1828 = vmatprep.mubr.f32.mxu0 0.0
    %1829 = vmatmul.mubr.f32.gmra.mrb[0].mxu0 %v1752
    %v1830 = vpop.f32.mrb[0].mxu0
    %v1831 = vadd.f32 %v1743, %v1830
    %v1832 = vpop.f32.mrb[0].mxu0
    %1833 = vdwg.mxu0
    %v1834 = vmax.f32 %v1821, 0.0
    %v1835 = vmax.f32 %v1826, 0.0
    %v1836 = vmax.f32 %v1831, 0.0
    %vm1837 = vcmask 31744
    %1838 = vst.msk [vmem:[%s14] sm:$0xff] %vm1837, %v1834
    %1839 = vst.msk [vmem:[%s14 + $0x8] sm:$0xff] %vm1837, %v1835
    %vm1840 = vcmask 27648
    %1841 = vst.msk [vmem:[%s14 + $0x10] sm:$0xf] %vm1840, %v1836
    // Predicated region
    $region78: #{model_forward.1} parent=1 // pred_check
      _
    $region79: #{model_forward.1} parent=1 // pred_check_branch
      %1843 = sbr.rel (0) target = $region81
    $region80: #{model_forward.1} parent=1 // pred_region
      _
    $region81: #{model_forward.1} parent=1 // pred_fallthru
      _
    // Predicated region
    $region82: #{model_forward.1} parent=1 // pred_check
      _
    $region83: #{model_forward.1} parent=1 // pred_check_branch
      %1845 = sbr.rel (0) target = $region85
    $region84: #{model_forward.1} parent=1 // pred_region
      _
    $region85: #{model_forward.1} parent=1 // pred_fallthru
      _
    %1846 = vsyncpa [#allocation3], 1
    %1847 = vsyncpa [#allocation5], 1
    %1848 = vsyncpa [#allocation8], 1

</llo_original>
